<compile_context>
chip_gen: v7x
topology: tpu7x:2x2x1
jax: 0.10.0
libtpu: 0.0.40
codegen_flags: <defaults>
</compile_context>

<pallas_src>
import functools

import jax
import jax.numpy as jnp
from jax.experimental import pallas as pl
from jax.experimental.pallas import tpu as pltpu

BN_EPS = 1e-5
LANE = 128
TK = 512          # contraction-tile width for the MXU conv (multiple of 128)
TM1_MAX = 512     # pass-1 rows per tile (governed by VMEM)
TM2_MAX = 1024    # pass-2 rows per tile (pure HBM-bound elementwise pass)


def _round_up(x, m):
    return (x + m - 1) // m * m


def _cpad(c):
    # v6e/v7x MXUs are 2x256x256: prefer 256-wide output tiles once Cout > 128.
    return _round_up(c, 256) if c > 128 else _round_up(c, LANE)


def _vmem_limit_bytes():
    # The default scoped VMEM limits (16 MiB v5e, 32 MiB v6e/v7x) are the
    # binding constraint, not physical VMEM (128/128/64 MiB).  Budget ~3/4 of
    # physical, capped at 100 MiB; fall back to 48 MiB (safe on every gen).
    try:
        phys = pltpu.get_tpu_info().vmem_capacity_bytes
        return int(min(100 << 20, phys * 3 // 4))
    except Exception:
        return 48 << 20


# ---------------------------- Pallas kernels --------------------------------

def _conv_mxu_kernel(f_ref, w_ref, y_ref, s_ref, acc_ref):
    """Dense conv as a contraction-tiled MXU matmul with fused BN statistics.

    Grid = (M-tiles ['parallel'], KKC-tiles ['arbitrary', last]).
    f_ref : (tm, tk)    bf16 input-feature tile
    w_ref : (tk, Cpad)  bf16 weight tile
    y_ref : (tm, Cpad)  bf16 conv output tile (lane dense)
    s_ref : (8, Cpad)   f32 per-M-tile stats: row0 = sum(y), row1 = sum(y*y)
    acc_ref:(tm, Cpad)  f32 scratch accumulator
    """
    k = pl.program_id(1)

    @pl.when(k == 0)
    def _():
        acc_ref[...] = jnp.zeros_like(acc_ref)

    acc_ref[...] += jnp.dot(f_ref[...], w_ref[...],
                            preferred_element_type=jnp.float32)

    @pl.when(k == pl.num_programs(1) - 1)
    def _():
        yb = acc_ref[...].astype(y_ref.dtype)
        y_ref[...] = yb
        # Stats from the *stored* (bf16-rounded) value so pass 2 normalizes
        # exactly what the statistics describe.
        yf = yb.astype(jnp.float32)
        s_ref[0:1, :] = jnp.sum(yf, axis=0, keepdims=True)
        s_ref[1:2, :] = jnp.sum(yf * yf, axis=0, keepdims=True)
        # rows 2..7 of the stats tile are never read downstream: left unwritten.


def _dwconv_vpu_kernel(x_ref, w_ref, y_ref, s_ref, acc_ref):
    """Grouped / depthwise conv as a lane-parallel VPU multiply-accumulate.

    Grid = (M-tiles ['parallel'], taps ['arbitrary', last]), taps = K*K*Cin_g.
    x_ref : (1, tm, Cpad) bf16 tap input tile (channels pre-gathered per Cout)
    w_ref : (1, 8, Cpad)  f32 per-channel tap weight (row 0 valid)
    y_ref : (tm, Cpad)    bf16 conv output tile
    s_ref : (8, Cpad)     f32 per-M-tile stats (rows 0/1)
    acc_ref:(tm, Cpad)    f32 scratch accumulator
    """
    t = pl.program_id(1)

    @pl.when(t == 0)
    def _():
        acc_ref[...] = jnp.zeros_like(acc_ref)

    w = w_ref[...][0, 0:1, :]                       # (1, Cpad) f32
    acc_ref[...] += x_ref[0].astype(jnp.float32) * w

    @pl.when(t == pl.num_programs(1) - 1)
    def _():
        yb = acc_ref[...].astype(y_ref.dtype)
        y_ref[...] = yb
        yf = yb.astype(jnp.float32)
        s_ref[0:1, :] = jnp.sum(yf, axis=0, keepdims=True)
        s_ref[1:2, :] = jnp.sum(yf * yf, axis=0, keepdims=True)


def _bn_silu_kernel(y_ref, a_ref, b_ref, o_ref):
    """z = y * a + b ; out = z * sigmoid(z)   (a, b precomputed from BN stats)."""
    z = y_ref[...].astype(jnp.float32) * a_ref[...] + b_ref[...]
    o_ref[...] = (z * jax.nn.sigmoid(z)).astype(o_ref.dtype)


# --------------------------- pallas_call wrappers ----------------------------

def _pallas_conv_mxu(feats, wmat, tm, tk):
    Mpad, KKCp = feats.shape
    Cpad = wmat.shape[1]
    nmt = Mpad // tm
    nkt = KKCp // tk
    flops = 2 * Mpad * KKCp * Cpad
    bytes_accessed = (Mpad * KKCp + nmt * KKCp * Cpad + Mpad * Cpad) * 2 \
        + nmt * 8 * Cpad * 4
    return pl.pallas_call(
        _conv_mxu_kernel,
        out_shape=(
            jax.ShapeDtypeStruct((Mpad, Cpad), jnp.bfloat16),
            jax.ShapeDtypeStruct((nmt * 8, Cpad), jnp.float32),
        ),
        grid=(nmt, nkt),
        in_specs=[
            pl.BlockSpec((tm, tk), lambda i, k: (i, k)),
            pl.BlockSpec((tk, Cpad), lambda i, k: (k, 0)),
        ],
        out_specs=(
            pl.BlockSpec((tm, Cpad), lambda i, k: (i, 0)),
            pl.BlockSpec((8, Cpad), lambda i, k: (i, 0)),
        ),
        scratch_shapes=[pltpu.VMEM((tm, Cpad), jnp.float32)],
        compiler_params=pltpu.CompilerParams(
            dimension_semantics=("parallel", "arbitrary"),
            vmem_limit_bytes=_vmem_limit_bytes()),
        cost_estimate=pl.CostEstimate(flops=flops, transcendentals=0,
                                      bytes_accessed=bytes_accessed),
    )(feats, wmat)


def _pallas_dwconv(x_taps, wtaps, tm):
    T, Mpad, Cpad = x_taps.shape
    nmt = Mpad // tm
    flops = 2 * T * Mpad * Cpad
    bytes_accessed = T * Mpad * Cpad * 2 + nmt * T * 8 * Cpad * 4 \
        + Mpad * Cpad * 2 + nmt * 8 * Cpad * 4
    return pl.pallas_call(
        _dwconv_vpu_kernel,
        out_shape=(
            jax.ShapeDtypeStruct((Mpad, Cpad), jnp.bfloat16),
            jax.ShapeDtypeStruct((nmt * 8, Cpad), jnp.float32),
        ),
        grid=(nmt, T),
        in_specs=[
            pl.BlockSpec((1, tm, Cpad), lambda i, t: (t, i, 0)),
            pl.BlockSpec((1, 8, Cpad), lambda i, t: (t, 0, 0)),
        ],
        out_specs=(
            pl.BlockSpec((tm, Cpad), lambda i, t: (i, 0)),
            pl.BlockSpec((8, Cpad), lambda i, t: (i, 0)),
        ),
        scratch_shapes=[pltpu.VMEM((tm, Cpad), jnp.float32)],
        compiler_params=pltpu.CompilerParams(
            dimension_semantics=("parallel", "arbitrary"),
            vmem_limit_bytes=_vmem_limit_bytes()),
        cost_estimate=pl.CostEstimate(flops=flops, transcendentals=0,
                                      bytes_accessed=bytes_accessed),
    )(x_taps, wtaps)


def _pallas_bn_silu(y, a, b, tm):
    Mpad, Cpad = y.shape
    nmt = Mpad // tm
    bytes_accessed = 2 * Mpad * Cpad * 2 + 2 * Cpad * 4
    return pl.pallas_call(
        _bn_silu_kernel,
        out_shape=jax.ShapeDtypeStruct((Mpad, Cpad), jnp.bfloat16),
        grid=(nmt,),
        in_specs=[
            pl.BlockSpec((tm, Cpad), lambda i: (i, 0)),
            pl.BlockSpec((1, Cpad), lambda i: (0, 0)),
            pl.BlockSpec((1, Cpad), lambda i: (0, 0)),
        ],
        out_specs=pl.BlockSpec((tm, Cpad), lambda i: (i, 0)),
        input_output_aliases={0: 0},     # y is dead after this pass: write in place
        compiler_params=pltpu.CompilerParams(
            dimension_semantics=("parallel",),
            vmem_limit_bytes=_vmem_limit_bytes()),
        cost_estimate=pl.CostEstimate(flops=4 * Mpad * Cpad,
                                      transcendentals=Mpad * Cpad,
                                      bytes_accessed=bytes_accessed),
    )(y, a, b)


# ------------------------------ Glue (JAX) -----------------------------------

def _im2col(x_nhwc, K, stride, padding):
    # Only used for dense K>1 convs (in EfficientNet: the 3x3 stem only; every
    # other spatial conv is depthwise and every channel-mixing conv is 1x1).
    # TODO(synk): replace with in-kernel shifted-window accumulation over a K*K
    # grid axis (halo'd NHWC row DMA) to remove the K^2 activation-traffic
    # inflation for the stem.
    N, H, W, C = x_nhwc.shape
    Ho = (H + 2 * padding - K) // stride + 1
    Wo = (W + 2 * padding - K) // stride + 1
    xp = jnp.pad(x_nhwc, ((0, 0), (padding, padding), (padding, padding), (0, 0)))
    cols = []
    for kh in range(K):
        for kw in range(K):
            cols.append(xp[:, kh:kh + Ho * stride:stride,
                           kw:kw + Wo * stride:stride, :])
    patches = jnp.concatenate(cols, axis=-1)            # (N, Ho, Wo, K*K*C)
    return patches.reshape(N * Ho * Wo, K * K * C), Ho, Wo


def prepare_cnn_block_params(conv_w, gamma, beta, *, kernel, stride, padding,
                             groups=1):
    """One-time (init-time) weight / layout preparation.

    Hoisted out of the jitted per-step hot path so a full network pays this
    only once per block, not per forward call.
    """
    del stride, padding  # layout does not depend on them
    Cout, Cin_g, K, _ = conv_w.shape
    assert K == kernel
    Cin = Cin_g * groups
    Cpad = _cpad(Cout)
    params = {
        "gamma_p": jnp.pad(gamma.astype(jnp.float32), (0, Cpad - Cout)),
        "beta_p": jnp.pad(beta.astype(jnp.float32), (0, Cpad - Cout)),
    }
    if groups == 1:
        # OIHW -> (kh, kw, cin, cout) -> (K*K*Cin, Cout); row order matches the
        # (kh, kw, cin) feature order used by the forward pass.
        w = jnp.transpose(conv_w.astype(jnp.float32), (2, 3, 1, 0))
        KKC = K * K * Cin
        wmat = w.reshape(KKC, Cout)
        KKCp = KKC if KKC <= TK else _round_up(KKC, TK)
        wmat = jnp.pad(wmat, ((0, KKCp - KKC), (0, Cpad - Cout)))
        params["wmat"] = wmat.astype(jnp.bfloat16)
    else:
        # Grouped / depthwise: per-tap per-output-channel weight vector and a
        # per-(j) input-channel gather map.  No block-diagonal weight, no
        # per-group scatter loop.
        Cout_g = Cout // groups
        T = K * K * Cin_g
        wv = jnp.transpose(conv_w.astype(jnp.float32),
                           (2, 3, 1, 0)).reshape(T, Cout)   # wv[t, co]
        wtaps = jnp.zeros((T, 8, Cpad), jnp.float32).at[:, 0, :Cout].set(wv)
        params["wtaps"] = wtaps
        co = jnp.arange(Cout, dtype=jnp.int32)
        cin_idx = (co // Cout_g)[None, :] * Cin_g \
            + jnp.arange(Cin_g, dtype=jnp.int32)[:, None]   # (Cin_g, Cout)
        params["cin_idx"] = cin_idx
    return params


def cnn_block_forward(x_nchw, params, *, kernel, stride, padding, groups,
                      out_channels):
    """SiLU(BatchNorm2d(Conv2d(x, bias=False))) with training-mode batch stats.

    Returns NCHW bfloat16 activations (bf16 activations are standard for the
    next block; they also halve the epilogue + transpose HBM traffic).
    """
    N, Cin, H, W = x_nchw.shape
    K = kernel
    Cout = out_channels
    Cpad = _cpad(Cout)
    Ho = (H + 2 * padding - K) // stride + 1
    Wo = (W + 2 * padding - K) // stride + 1
    M = N * Ho * Wo

    # Row-tile sizes: pass-1 governed by VMEM, pass-2 larger (pure HBM-bound).
    if M >= TM2_MAX:
        Mpad = _round_up(M, TM2_MAX)
        tm1, tm2 = TM1_MAX, TM2_MAX
    else:
        Mpad = _round_up(M, 16)
        tm1 = tm2 = Mpad

    # NCHW -> NHWC once at the module boundary.
    # TODO(synk): in a full network keep activations NHWC / bf16 end-to-end so
    # this transpose disappears from the per-block hot path.
    x = jnp.transpose(x_nchw, (0, 2, 3, 1)).astype(jnp.bfloat16)

    if groups == 1:
        if K == 1 and padding == 0:
            # Pointwise conv (bulk of EfficientNet FLOPs): no patch extraction,
            # no im2col inflation — just a (strided) view + reshape.
            if stride > 1:
                x = x[:, ::stride, ::stride, :]
            feats = x.reshape(M, Cin)
            KKC = Cin
        else:
            feats, _, _ = _im2col(x, K, stride, padding)   # stem conv only
            KKC = K * K * Cin
        KKCp = KKC if KKC <= TK else _round_up(KKC, TK)
        tk = KKCp if KKCp <= TK else TK
        feats = jnp.pad(feats, ((0, Mpad - M), (0, KKCp - KKC)))
        y, stats = _pallas_conv_mxu(feats, params["wmat"], tm1, tk)
    else:
        # Grouped / depthwise conv: tap-stacked VPU multiply-accumulate.
        # TODO(synk): for production depthwise stages replace the tap-stacked
        # HBM layout with in-kernel halo'd windowing to drop the K^2 read
        # inflation (the conv itself is memory-bound VPU work either way).
        Cin_g = Cin // groups
        xp = jnp.pad(x, ((0, 0), (padding, padding), (padding, padding), (0, 0)))
        identity_gather = (Cin_g == 1 and Cout == Cin)
        taps = []
        for kh in range(K):
            for kw in range(K):
                win = xp[:, kh:kh + Ho * stride:stride,
                         kw:kw + Wo * stride:stride, :]          # (N,Ho,Wo,Cin)
                for j in range(Cin_g):
                    g = win if identity_gather else jnp.take(
                        win, params["cin_idx"][j], axis=-1)      # (N,Ho,Wo,Cout)
                    taps.append(g.reshape(M, Cout))
        x_taps = jnp.stack(taps, axis=0)                         # (T, M, Cout)
        x_taps = jnp.pad(x_taps, ((0, 0), (0, Mpad - M), (0, Cpad - Cout)))
        y, stats = _pallas_dwconv(x_taps, params["wtaps"], tm1)

    # Finalize BatchNorm batch statistics (biased variance, eps=1e-5) into a
    # single per-channel scale/shift.  Padded M rows are zero -> contribute 0.
    # NOTE: var = E[y^2] - E[y]^2 over f32 per-tile partial sums; for very
    # large M with |mean| >> std this cancels in f32.
    # TODO(synk): switch to a Welford-style per-tile merge if that regime matters.
    nmt = Mpad // tm1
    stats = stats.reshape(nmt, 8, Cpad)
    ssum = jnp.sum(stats[:, 0, :], axis=0)
    ssq = jnp.sum(stats[:, 1, :], axis=0)
    mean = ssum / M
    var = jnp.maximum(ssq / M - mean * mean, 0.0)
    a = params["gamma_p"] * jax.lax.rsqrt(var + BN_EPS)
    b = params["beta_p"] - mean * a

    # Pass 2: z = y*a + b ; SiLU — bf16 in, bf16 out, written in place over y.
    z = _pallas_bn_silu(y, a.reshape(1, Cpad), b.reshape(1, Cpad), tm2)

    z = z[:M, :Cout].reshape(N, Ho, Wo, Cout)
    # TODO(synk): keep NHWC for the next block; transpose kept only to match the
    # PyTorch module's NCHW interface.
    return jnp.transpose(z, (0, 3, 1, 2))


# --------------------------- Pure-JAX reference ------------------------------

def reference_forward(x_nchw, conv_w, gamma, beta, *, stride, padding, groups=1):
    y = jax.lax.conv_general_dilated(
        x_nchw.astype(jnp.float32), conv_w.astype(jnp.float32),
        window_strides=(stride, stride),
        padding=[(padding, padding), (padding, padding)],
        dimension_numbers=("NCHW", "OIHW", "NCHW"),
        feature_group_count=groups)
    mean = jnp.mean(y, axis=(0, 2, 3), keepdims=True)
    var = jnp.mean(jnp.square(y - mean), axis=(0, 2, 3), keepdims=True)
    z = (y - mean) * jax.lax.rsqrt(var + BN_EPS)
    z = z * gamma.reshape(1, -1, 1, 1) + beta.reshape(1, -1, 1, 1)
    return z * jax.nn.sigmoid(z)


# ---------------------------------- Main -------------------------------------

if __name__ == "__main__":
    def run_case(N, Cin, H, W, Cout, K, stride, padding, groups, key):
        kx, kw = jax.random.split(key)
        x = jax.random.normal(kx, (N, Cin, H, W), dtype=jnp.float32)
        conv_w = jax.random.normal(kw, (Cout, Cin // groups, K, K),
                                   dtype=jnp.float32) * 0.1
        gamma = jnp.ones((Cout,), dtype=jnp.float32)   # BN default init
        beta = jnp.zeros((Cout,), dtype=jnp.float32)

        # Weight prep is done once (init-time), outside the jitted hot path.
        params = prepare_cnn_block_params(conv_w, gamma, beta, kernel=K,
                                          stride=stride, padding=padding,
                                          groups=groups)
        fwd = jax.jit(functools.partial(cnn_block_forward, kernel=K,
                                        stride=stride, padding=padding,
                                        groups=groups, out_channels=Cout))
        out = jax.block_until_ready(fwd(x, params)).astype(jnp.float32)
        ref = jax.block_until_ready(
            reference_forward(x, conv_w, gamma, beta, stride=stride,
                              padding=padding, groups=groups))
        assert out.shape == ref.shape, (out.shape, ref.shape)
        # bf16 MXU operands + bf16 conv/activation storage -> relaxed tolerance.
        assert jnp.allclose(out, ref, rtol=5e-2, atol=5e-2), \
            float(jnp.max(jnp.abs(out - ref)))

    key = jax.random.PRNGKey(0)
    k1, k2, k3 = jax.random.split(key, 3)
    # CNNBlock(4, 8, kernel=3, stride=1, padding=1): dense 3x3 (stem-style) conv.
    run_case(2, 4, 16, 16, 8, 3, 1, 1, 1, k1)
    # Pointwise 1x1 conv (MBConv expand/project): no-im2col MXU fast path.
    run_case(2, 16, 8, 8, 32, 1, 1, 0, 1, k2)
    # Grouped / depthwise conv: lane-parallel VPU path (no block-diagonal weight).
    run_case(2, 4, 16, 16, 8, 3, 1, 1, 4, k3)
    print("KERNEL_OK")
</pallas_src>

<mosaic_0001>
module attributes {stable_mosaic.version = 11 : i64} {
  func.func @_bn_silu_kernel(%arg0: i32, %arg1: memref<512x128xbf16, #tpu.memory_space<vmem>>, %arg2: memref<1x128xf32, #tpu.memory_space<vmem>>, %arg3: memref<1x128xf32, #tpu.memory_space<vmem>>, %arg4: memref<512x128xbf16, #tpu.memory_space<vmem>>) attributes {dimension_semantics = [#tpu.dimension_semantics<parallel>], iteration_bounds = array<i64: 1>, scalar_prefetch = 0 : i64, scratch_operands = 0 : i64, tpu.core_type = #tpu.core_type<tc>, window_params = [{transform_indices = @transform_0, window_bounds = array<i64: 512, 128>}, {pipeline_mode = #tpu.pipeline_mode<synchronous>, transform_indices = @transform_1, window_bounds = array<i64: 1, 128>}, {pipeline_mode = #tpu.pipeline_mode<synchronous>, transform_indices = @transform_2, window_bounds = array<i64: 1, 128>}, {transform_indices = @transform_3, window_bounds = array<i64: 512, 128>}]} {
    %c0 = arith.constant 0 : index
    %c0_0 = arith.constant 0 : index
    %0 = vector.load %arg1[%c0, %c0_0] : memref<512x128xbf16, #tpu.memory_space<vmem>>, vector<512x128xbf16>
    %1 = arith.extf %0 : vector<512x128xbf16> to vector<512x128xf32>
    %c0_1 = arith.constant 0 : index
    %c0_2 = arith.constant 0 : index
    %2 = vector.load %arg2[%c0_1, %c0_2] : memref<1x128xf32, #tpu.memory_space<vmem>>, vector<1x128xf32>
    %3 = vector.broadcast %2 : vector<1x128xf32> to vector<512x128xf32>
    %4 = arith.mulf %1, %3 : vector<512x128xf32>
    %c0_3 = arith.constant 0 : index
    %c0_4 = arith.constant 0 : index
    %5 = vector.load %arg3[%c0_3, %c0_4] : memref<1x128xf32, #tpu.memory_space<vmem>>, vector<1x128xf32>
    %6 = vector.broadcast %5 : vector<1x128xf32> to vector<512x128xf32>
    %7 = arith.addf %4, %6 : vector<512x128xf32>
    %8 = arith.negf %7 : vector<512x128xf32>
    %9 = math.exp %8 : vector<512x128xf32>
    %cst = arith.constant 1.000000e+00 : f32
    %10 = vector.broadcast %cst : f32 to vector<512x128xf32>
    %11 = arith.addf %10, %9 : vector<512x128xf32>
    %12 = arith.divf %10, %11 : vector<512x128xf32>
    %13 = arith.mulf %7, %12 : vector<512x128xf32>
    %14 = arith.truncf %13 : vector<512x128xf32> to vector<512x128xbf16>
    %c0_5 = arith.constant 0 : index
    %c0_6 = arith.constant 0 : index
    %15 = vector.load %arg4[%c0_5, %c0_6] : memref<512x128xbf16, #tpu.memory_space<vmem>>, vector<512x128xbf16>
    tpu.vector_store %arg4[%c0_5, %c0_6], %14 {strides = array<i32>} : memref<512x128xbf16, #tpu.memory_space<vmem>>, vector<512x128xbf16>,
    return
  }
  func.func @transform_0(%arg0: i32) -> (i32, i32) {
    %c0_i32 = arith.constant 0 : i32
    %c0_i32_0 = arith.constant 0 : i32
    return %arg0, %c0_i32 : i32, i32
  }
  func.func @transform_1(%arg0: i32) -> (i32, i32) {
    %c0_i32 = arith.constant 0 : i32
    %c0_i32_0 = arith.constant 0 : i32
    %c0_i32_1 = arith.constant 0 : i32
    return %c0_i32, %c0_i32_0 : i32, i32
  }
  func.func @transform_2(%arg0: i32) -> (i32, i32) {
    %c0_i32 = arith.constant 0 : i32
    %c0_i32_0 = arith.constant 0 : i32
    %c0_i32_1 = arith.constant 0 : i32
    return %c0_i32, %c0_i32_0 : i32, i32
  }
  func.func @transform_3(%arg0: i32) -> (i32, i32) {
    %c0_i32 = arith.constant 0 : i32
    %c0_i32_0 = arith.constant 0 : i32
    return %arg0, %c0_i32 : i32, i32
  }
}

module attributes {stable_mosaic.version = 11 : i64} {
  func.func @_conv_mxu_kernel(%arg0: i32, %arg1: i32, %arg2: memref<512x36xbf16, #tpu.memory_space<vmem>>, %arg3: memref<36x128xbf16, #tpu.memory_space<vmem>>, %arg4: memref<512x128xbf16, #tpu.memory_space<vmem>>, %arg5: memref<8x128xf32, #tpu.memory_space<vmem>>, %arg6: memref<512x128xf32, #tpu.memory_space<vmem>>) attributes {dimension_semantics = [#tpu.dimension_semantics<parallel>, #tpu.dimension_semantics<arbitrary>], iteration_bounds = array<i64: 1, 1>, scalar_prefetch = 0 : i64, scratch_operands = 1 : i64, tpu.core_type = #tpu.core_type<tc>, window_params = [{transform_indices = @transform_0, window_bounds = array<i64: 512, 36>}, {transform_indices = @transform_1, window_bounds = array<i64: 36, 128>}, {transform_indices = @transform_2, window_bounds = array<i64: 512, 128>}, {transform_indices = @transform_3, window_bounds = array<i64: 8, 128>}]} {
    %c0_i32 = arith.constant 0 : i32
    %0 = arith.cmpi eq, %arg1, %c0_i32 : i32
    %1 = arith.extui %0 : i1 to i32
    %c0_i32_0 = arith.constant 0 : i32
    %2 = arith.cmpi ne, %1, %c0_i32_0 : i32
    scf.if %2 {
      %cst_10 = arith.constant 0.000000e+00 : f32
      %12 = vector.broadcast %cst_10 : f32 to vector<512x128xf32>
      %c0_11 = arith.constant 0 : index
      %c0_12 = arith.constant 0 : index
      %13 = vector.load %arg6[%c0_11, %c0_12] : memref<512x128xf32, #tpu.memory_space<vmem>>, vector<512x128xf32>
      tpu.vector_store %arg6[%c0_11, %c0_12], %12 {strides = array<i32>} : memref<512x128xf32, #tpu.memory_space<vmem>>, vector<512x128xf32>,
    } else {
    }
    %c0 = arith.constant 0 : index
    %c0_1 = arith.constant 0 : index
    %3 = vector.load %arg6[%c0, %c0_1] : memref<512x128xf32, #tpu.memory_space<vmem>>, vector<512x128xf32>
    %c0_2 = arith.constant 0 : index
    %c0_3 = arith.constant 0 : index
    %4 = vector.load %arg2[%c0_2, %c0_3] : memref<512x36xbf16, #tpu.memory_space<vmem>>, vector<512x36xbf16>
    %c0_4 = arith.constant 0 : index
    %c0_5 = arith.constant 0 : index
    %5 = vector.load %arg3[%c0_4, %c0_5] : memref<36x128xbf16, #tpu.memory_space<vmem>>, vector<36x128xbf16>
    %cst = arith.constant dense<0.000000e+00> : vector<512x128xf32>
    %6 = tpu.matmul %4, %5, %cst {dimension_numbers = #tpu.dot_dimension_numbers<[1], [0], [0], [1], [0, 0, 1, 1], [], []>} : vector<512x36xbf16>, vector<36x128xbf16>, vector<512x128xf32> -> vector<512x128xf32>
    %7 = arith.addf %3, %6 : vector<512x128xf32>
    %c0_6 = arith.constant 0 : index
    %c0_7 = arith.constant 0 : index
    %8 = vector.load %arg6[%c0_6, %c0_7] : memref<512x128xf32, #tpu.memory_space<vmem>>, vector<512x128xf32>
    tpu.vector_store %arg6[%c0_6, %c0_7], %7 {strides = array<i32>} : memref<512x128xf32, #tpu.memory_space<vmem>>, vector<512x128xf32>,
    %c0_i32_8 = arith.constant 0 : i32
    %9 = arith.cmpi eq, %arg1, %c0_i32_8 : i32
    %10 = arith.extui %9 : i1 to i32
    %c0_i32_9 = arith.constant 0 : i32
    %11 = arith.cmpi ne, %10, %c0_i32_9 : i32
    scf.if %11 {
      %c0_10 = arith.constant 0 : index
      %c0_11 = arith.constant 0 : index
      %12 = vector.load %arg6[%c0_10, %c0_11] : memref<512x128xf32, #tpu.memory_space<vmem>>, vector<512x128xf32>
      %13 = arith.truncf %12 : vector<512x128xf32> to vector<512x128xbf16>
      %c0_12 = arith.constant 0 : index
      %c0_13 = arith.constant 0 : index
      %14 = vector.load %arg4[%c0_12, %c0_13] : memref<512x128xbf16, #tpu.memory_space<vmem>>, vector<512x128xbf16>
      tpu.vector_store %arg4[%c0_12, %c0_13], %13 {strides = array<i32>} : memref<512x128xbf16, #tpu.memory_space<vmem>>, vector<512x128xbf16>,
      %15 = arith.extf %13 : vector<512x128xbf16> to vector<512x128xf32>
      %cst_14 = arith.constant dense<0.000000e+00> : vector<128xf32>
      %16 = vector.multi_reduction <add>, %15, %cst_14 [0] : vector<512x128xf32> to vector<128xf32>
      %17 = vector.shape_cast %16 : vector<128xf32> to vector<1x128xf32>
      %c0_15 = arith.constant 0 : index
      %c0_16 = arith.constant 0 : index
      %18 = vector.load %arg5[%c0_15, %c0_16] : memref<8x128xf32, #tpu.memory_space<vmem>>, vector<1x128xf32>
      tpu.vector_store %arg5[%c0_15, %c0_16], %17 {strides = array<i32>} : memref<8x128xf32, #tpu.memory_space<vmem>>, vector<1x128xf32>,
      %19 = arith.mulf %15, %15 : vector<512x128xf32>
      %cst_17 = arith.constant dense<0.000000e+00> : vector<128xf32>
      %20 = vector.multi_reduction <add>, %19, %cst_17 [0] : vector<512x128xf32> to vector<128xf32>
      %21 = vector.shape_cast %20 : vector<128xf32> to vector<1x128xf32>
      %c1 = arith.constant 1 : index
      %c0_18 = arith.constant 0 : index
      %22 = vector.load %arg5[%c1, %c0_18] : memref<8x128xf32, #tpu.memory_space<vmem>>, vector<1x128xf32>
      tpu.vector_store %arg5[%c1, %c0_18], %21 {strides = array<i32>} : memref<8x128xf32, #tpu.memory_space<vmem>>, vector<1x128xf32>,
    } else {
    }
    return
  }
  func.func @transform_0(%arg0: i32, %arg1: i32) -> (i32, i32) {
    %c0_i32 = arith.constant 0 : i32
    return %arg0, %arg1 : i32, i32
  }
  func.func @transform_1(%arg0: i32, %arg1: i32) -> (i32, i32) {
    %c0_i32 = arith.constant 0 : i32
    %c0_i32_0 = arith.constant 0 : i32
    return %arg1, %c0_i32 : i32, i32
  }
  func.func @transform_2(%arg0: i32, %arg1: i32) -> (i32, i32) {
    %c0_i32 = arith.constant 0 : i32
    %c0_i32_0 = arith.constant 0 : i32
    return %arg0, %c0_i32 : i32, i32
  }
  func.func @transform_3(%arg0: i32, %arg1: i32) -> (i32, i32) {
    %c0_i32 = arith.constant 0 : i32
    %c0_i32_0 = arith.constant 0 : i32
    return %arg0, %c0_i32 : i32, i32
  }
}

</mosaic_0001>

<llo_original>
// kernel: cnn_block_forward.3
$region0: #{cnn_block_forward.3}
  #allocation0 [shape = 'u32[]', space=smem, size = 0x4, offset = 0x4, fixed_abs, tag = 'smem constant byte address 0x4 - core index']
  #allocation1 [shape = 'u32[144,128]{1,0:T(1,128)}', space=vmem, size = 0x12000, scoped, tag = 'internal scratch']
  %s0 = inlined_call_operand.vmem [shape: bf16[512,128], index: 0, kind: input, shape index: {}, may-alias: {0,3}]
  %s1 = inlined_call_operand.vmem [shape: f32[1,128], index: 1, kind: input, shape index: {}]
  %s2 = inlined_call_operand.vmem [shape: f32[1,128], index: 2, kind: input, shape index: {}]
  %s3 = inlined_call_operand.vmem [shape: bf16[512,128], index: 3, kind: output, shape index: {}, may-alias: {0,3}]
  %s4 = sld [smem:[#allocation0]]
  $region22: #{cnn_block_forward.3} parent=0
    _
  %s6 = ssub.s32 1, %s4
  %s7 = scalar_select 0, %s6, %s4
  // Predicated region
  $region2: #{cnn_block_forward.3} parent=0 // pred_check
    _
  $region3: #{cnn_block_forward.3} parent=0 // pred_check_branch
    %9 = sbr.rel (0) target = $region5
  $region4: #{cnn_block_forward.3} parent=0 // pred_region
    _
  $region5: #{cnn_block_forward.3} parent=0 // pred_fallthru
    _
  // Predicated region
  $region6: #{cnn_block_forward.3} parent=0 // pred_check
    _
  $region7: #{cnn_block_forward.3} parent=0 // pred_check_branch
    %11 = sbr.rel (0) target = $region9
  $region8: #{cnn_block_forward.3} parent=0 // pred_region
    _
  $region9: #{cnn_block_forward.3} parent=0 // pred_fallthru
    _
  // Predicated region
  $region10: #{cnn_block_forward.3} parent=0 // pred_check
    _
  $region11: #{cnn_block_forward.3} parent=0 // pred_check_branch
    %13 = sbr.rel (0) target = $region13
  $region12: #{cnn_block_forward.3} parent=0 // pred_region
    _
  $region13: #{cnn_block_forward.3} parent=0 // pred_fallthru
    _
  %v14 = vld [vmem:[%s0] sm:$0xf]
  %v15 = vld [vmem:[%s0 + $0x4] sm:$0xf]
  %v16 = vld [vmem:[%s0 + $0x8] sm:$0xf]
  %v17 = vld [vmem:[%s0 + $0xc] sm:$0xf]
  %v18 = vld [vmem:[%s0 + $0x10] sm:$0xf]
  %v19 = vld [vmem:[%s0 + $0x14] sm:$0xf]
  %v20 = vld [vmem:[%s0 + $0x18] sm:$0xf]
  %v21 = vld [vmem:[%s0 + $0x1c] sm:$0xf]
  %v22 = vld [vmem:[%s0 + $0x20] sm:$0xf]
  %v23 = vld [vmem:[%s0 + $0x24] sm:$0xf]
  %v24 = vld [vmem:[%s0 + $0x28] sm:$0xf]
  %v25 = vld [vmem:[%s0 + $0x2c] sm:$0xf]
  %v26 = vld [vmem:[%s0 + $0x30] sm:$0xf]
  %v27 = vld [vmem:[%s0 + $0x34] sm:$0xf]
  %v28 = vld [vmem:[%s0 + $0x38] sm:$0xf]
  %v29 = vld [vmem:[%s0 + $0x3c] sm:$0xf]
  %v30 = vld [vmem:[%s0 + $0x40] sm:$0xf]
  %v31 = vld [vmem:[%s0 + $0x44] sm:$0xf]
  %v32 = vld [vmem:[%s0 + $0x48] sm:$0xf]
  %v33 = vld [vmem:[%s0 + $0x4c] sm:$0xf]
  %v34 = vld [vmem:[%s0 + $0x50] sm:$0xf]
  %v35 = vld [vmem:[%s0 + $0x54] sm:$0xf]
  %v36 = vld [vmem:[%s0 + $0x58] sm:$0xf]
  %v37 = vld [vmem:[%s0 + $0x5c] sm:$0xf]
  %v38 = vld [vmem:[%s0 + $0x60] sm:$0xf]
  %v39 = vld [vmem:[%s0 + $0x64] sm:$0xf]
  %v40 = vld [vmem:[%s0 + $0x68] sm:$0xf]
  %v41 = vld [vmem:[%s0 + $0x6c] sm:$0xf]
  %v42 = vld [vmem:[%s0 + $0x70] sm:$0xf]
  %v43 = vld [vmem:[%s0 + $0x74] sm:$0xf]
  %v44 = vld [vmem:[%s0 + $0x78] sm:$0xf]
  %v45 = vld [vmem:[%s0 + $0x7c] sm:$0xf]
  %v46 = vld [vmem:[%s0 + $0x80] sm:$0xf]
  %v47 = vld [vmem:[%s0 + $0x84] sm:$0xf]
  %v48 = vld [vmem:[%s0 + $0x88] sm:$0xf]
  %v49 = vld [vmem:[%s0 + $0x8c] sm:$0xf]
  %v50 = vld [vmem:[%s0 + $0x90] sm:$0xf]
  %v51 = vld [vmem:[%s0 + $0x94] sm:$0xf]
  %v52 = vld [vmem:[%s0 + $0x98] sm:$0xf]
  %v53 = vld [vmem:[%s0 + $0x9c] sm:$0xf]
  %v54 = vld [vmem:[%s0 + $0xa0] sm:$0xf]
  %v55 = vld [vmem:[%s0 + $0xa4] sm:$0xf]
  %v56 = vld [vmem:[%s0 + $0xa8] sm:$0xf]
  %v57 = vld [vmem:[%s0 + $0xac] sm:$0xf]
  %v58 = vld [vmem:[%s0 + $0xb0] sm:$0xf]
  %v59 = vld [vmem:[%s0 + $0xb4] sm:$0xf]
  %v60 = vld [vmem:[%s0 + $0xb8] sm:$0xf]
  %v61 = vld [vmem:[%s0 + $0xbc] sm:$0xf]
  %v62 = vld [vmem:[%s0 + $0xc0] sm:$0xf]
  %v63 = vld [vmem:[%s0 + $0xc4] sm:$0xf]
  %v64 = vld [vmem:[%s0 + $0xc8] sm:$0xf]
  %v65 = vld [vmem:[%s0 + $0xcc] sm:$0xf]
  %v66 = vld [vmem:[%s0 + $0xd0] sm:$0xf]
  %v67 = vld [vmem:[%s0 + $0xd4] sm:$0xf]
  %v68 = vld [vmem:[%s0 + $0xd8] sm:$0xf]
  %v69 = vld [vmem:[%s0 + $0xdc] sm:$0xf]
  %v70 = vld [vmem:[%s0 + $0xe0] sm:$0xf]
  %v71 = vld [vmem:[%s0 + $0xe4] sm:$0xf]
  %v72 = vld [vmem:[%s0 + $0xe8] sm:$0xf]
  %v73 = vld [vmem:[%s0 + $0xec] sm:$0xf]
  %v74 = vld [vmem:[%s0 + $0xf0] sm:$0xf]
  %v75 = vld [vmem:[%s0 + $0xf4] sm:$0xf]
  %v76 = vld [vmem:[%s0 + $0xf8] sm:$0xf]
  %v77 = vld [vmem:[%s0 + $0xfc] sm:$0xf]
  %v78 = vunpack.c.l.bf16 %v14
  %v79 = vunpack.c.l.bf16 %v15
  %v80 = vunpack.c.l.bf16 %v16
  %v81 = vunpack.c.l.bf16 %v17
  %v82 = vunpack.c.l.bf16 %v18
  %v83 = vunpack.c.l.bf16 %v19
  %v84 = vunpack.c.l.bf16 %v20
  %v85 = vunpack.c.l.bf16 %v21
  %v86 = vunpack.c.l.bf16 %v22
  %v87 = vunpack.c.l.bf16 %v23
  %v88 = vunpack.c.l.bf16 %v24
  %v89 = vunpack.c.l.bf16 %v25
  %v90 = vunpack.c.l.bf16 %v26
  %v91 = vunpack.c.l.bf16 %v27
  %v92 = vunpack.c.l.bf16 %v28
  %v93 = vunpack.c.l.bf16 %v29
  %v94 = vunpack.c.l.bf16 %v30
  %v95 = vunpack.c.l.bf16 %v31
  %v96 = vunpack.c.l.bf16 %v32
  %v97 = vunpack.c.l.bf16 %v33
  %v98 = vunpack.c.l.bf16 %v34
  %v99 = vunpack.c.l.bf16 %v35
  %v100 = vunpack.c.l.bf16 %v36
  %v101 = vunpack.c.l.bf16 %v37
  %v102 = vunpack.c.l.bf16 %v38
  %v103 = vunpack.c.l.bf16 %v39
  %v104 = vunpack.c.l.bf16 %v40
  %v105 = vunpack.c.l.bf16 %v41
  %v106 = vunpack.c.l.bf16 %v42
  %v107 = vunpack.c.l.bf16 %v43
  %v108 = vunpack.c.l.bf16 %v44
  %v109 = vunpack.c.l.bf16 %v45
  %v110 = vunpack.c.l.bf16 %v46
  %v111 = vunpack.c.l.bf16 %v47
  %v112 = vunpack.c.l.bf16 %v48
  %v113 = vunpack.c.l.bf16 %v49
  %v114 = vunpack.c.l.bf16 %v50
  %v115 = vunpack.c.l.bf16 %v51
  %v116 = vunpack.c.l.bf16 %v52
  %v117 = vunpack.c.l.bf16 %v53
  %v118 = vunpack.c.l.bf16 %v54
  %v119 = vunpack.c.l.bf16 %v55
  %v120 = vunpack.c.l.bf16 %v56
  %v121 = vunpack.c.l.bf16 %v57
  %v122 = vunpack.c.l.bf16 %v58
  %v123 = vunpack.c.l.bf16 %v59
  %v124 = vunpack.c.l.bf16 %v60
  %v125 = vunpack.c.l.bf16 %v61
  %v126 = vunpack.c.l.bf16 %v62
  %v127 = vunpack.c.l.bf16 %v63
  %v128 = vunpack.c.l.bf16 %v64
  %v129 = vunpack.c.l.bf16 %v65
  %v130 = vunpack.c.l.bf16 %v66
  %v131 = vunpack.c.l.bf16 %v67
  %v132 = vunpack.c.l.bf16 %v68
  %v133 = vunpack.c.l.bf16 %v69
  %v134 = vunpack.c.l.bf16 %v70
  %v135 = vunpack.c.l.bf16 %v71
  %v136 = vunpack.c.l.bf16 %v72
  %v137 = vunpack.c.l.bf16 %v73
  %v138 = vunpack.c.l.bf16 %v74
  %v139 = vunpack.c.l.bf16 %v75
  %v140 = vunpack.c.l.bf16 %v76
  %v141 = vunpack.c.l.bf16 %v77
  %v142 = vld [vmem:[%s1] sm:$0x1]
  %v144 = vlaneseq
  %v145 = vshrl.u32 %v144, 7
  %v146 = vsub.s32 0, %v145
  %v147 = vrot.slane %v142, %v146
  %v149 = vmul.f32 %v78, %v147
  %v150 = vmul.f32 %v79, %v147
  %v151 = vmul.f32 %v80, %v147
  %v152 = vmul.f32 %v81, %v147
  %v153 = vmul.f32 %v82, %v147
  %v154 = vmul.f32 %v83, %v147
  %v155 = vmul.f32 %v84, %v147
  %v156 = vmul.f32 %v85, %v147
  %v157 = vmul.f32 %v86, %v147
  %v158 = vmul.f32 %v87, %v147
  %v159 = vmul.f32 %v88, %v147
  %v160 = vmul.f32 %v89, %v147
  %v161 = vmul.f32 %v90, %v147
  %v162 = vmul.f32 %v91, %v147
  %v163 = vmul.f32 %v92, %v147
  %v164 = vmul.f32 %v93, %v147
  %v165 = vmul.f32 %v94, %v147
  %v166 = vmul.f32 %v95, %v147
  %v167 = vmul.f32 %v96, %v147
  %v168 = vmul.f32 %v97, %v147
  %v169 = vmul.f32 %v98, %v147
  %v170 = vmul.f32 %v99, %v147
  %v171 = vmul.f32 %v100, %v147
  %v172 = vmul.f32 %v101, %v147
  %v173 = vmul.f32 %v102, %v147
  %v174 = vmul.f32 %v103, %v147
  %v175 = vmul.f32 %v104, %v147
  %v176 = vmul.f32 %v105, %v147
  %v177 = vmul.f32 %v106, %v147
  %v178 = vmul.f32 %v107, %v147
  %v179 = vmul.f32 %v108, %v147
  %v180 = vmul.f32 %v109, %v147
  %v181 = vmul.f32 %v110, %v147
  %v182 = vmul.f32 %v111, %v147
  %v183 = vmul.f32 %v112, %v147
  %v184 = vmul.f32 %v113, %v147
  %v185 = vmul.f32 %v114, %v147
  %v186 = vmul.f32 %v115, %v147
  %v187 = vmul.f32 %v116, %v147
  %v188 = vmul.f32 %v117, %v147
  %v189 = vmul.f32 %v118, %v147
  %v190 = vmul.f32 %v119, %v147
  %v191 = vmul.f32 %v120, %v147
  %v192 = vmul.f32 %v121, %v147
  %v193 = vmul.f32 %v122, %v147
  %v194 = vmul.f32 %v123, %v147
  %v195 = vmul.f32 %v124, %v147
  %v196 = vmul.f32 %v125, %v147
  %v197 = vmul.f32 %v126, %v147
  %v198 = vmul.f32 %v127, %v147
  %v199 = vmul.f32 %v128, %v147
  %v200 = vmul.f32 %v129, %v147
  %v201 = vmul.f32 %v130, %v147
  %v202 = vmul.f32 %v131, %v147
  %v203 = vmul.f32 %v132, %v147
  %v204 = vmul.f32 %v133, %v147
  %v205 = vmul.f32 %v134, %v147
  %v206 = vmul.f32 %v135, %v147
  %v207 = vmul.f32 %v136, %v147
  %v208 = vmul.f32 %v137, %v147
  %v209 = vmul.f32 %v138, %v147
  %v210 = vmul.f32 %v139, %v147
  %v211 = vmul.f32 %v140, %v147
  %v212 = vmul.f32 %v141, %v147
  %v213 = vld [vmem:[%s2] sm:$0x1]
  %v215 = vlaneseq
  %v216 = vshrl.u32 %v215, 7
  %v217 = vsub.s32 0, %v216
  %v218 = vrot.slane %v213, %v217
  %v220 = vadd.f32 %v149, %v218
  %v221 = vadd.f32 %v150, %v218
  %v222 = vadd.f32 %v151, %v218
  %v223 = vadd.f32 %v152, %v218
  %v224 = vadd.f32 %v153, %v218
  %v225 = vadd.f32 %v154, %v218
  %v226 = vadd.f32 %v155, %v218
  %v227 = vadd.f32 %v156, %v218
  %v228 = vadd.f32 %v157, %v218
  %v229 = vadd.f32 %v158, %v218
  %v230 = vadd.f32 %v159, %v218
  %v231 = vadd.f32 %v160, %v218
  %v232 = vadd.f32 %v161, %v218
  %v233 = vadd.f32 %v162, %v218
  %v234 = vadd.f32 %v163, %v218
  %v235 = vadd.f32 %v164, %v218
  %v236 = vadd.f32 %v165, %v218
  %v237 = vadd.f32 %v166, %v218
  %v238 = vadd.f32 %v167, %v218
  %v239 = vadd.f32 %v168, %v218
  %v240 = vadd.f32 %v169, %v218
  %v241 = vadd.f32 %v170, %v218
  %v242 = vadd.f32 %v171, %v218
  %v243 = vadd.f32 %v172, %v218
  %v244 = vadd.f32 %v173, %v218
  %v245 = vadd.f32 %v174, %v218
  %v246 = vadd.f32 %v175, %v218
  %v247 = vadd.f32 %v176, %v218
  %v248 = vadd.f32 %v177, %v218
  %v249 = vadd.f32 %v178, %v218
  %v250 = vadd.f32 %v179, %v218
  %v251 = vadd.f32 %v180, %v218
  %v252 = vadd.f32 %v181, %v218
  %v253 = vadd.f32 %v182, %v218
  %v254 = vadd.f32 %v183, %v218
  %v255 = vadd.f32 %v184, %v218
  %v256 = vadd.f32 %v185, %v218
  %v257 = vadd.f32 %v186, %v218
  %v258 = vadd.f32 %v187, %v218
  %v259 = vadd.f32 %v188, %v218
  %v260 = vadd.f32 %v189, %v218
  %v261 = vadd.f32 %v190, %v218
  %v262 = vadd.f32 %v191, %v218
  %v263 = vadd.f32 %v192, %v218
  %v264 = vadd.f32 %v193, %v218
  %v265 = vadd.f32 %v194, %v218
  %v266 = vadd.f32 %v195, %v218
  %v267 = vadd.f32 %v196, %v218
  %v268 = vadd.f32 %v197, %v218
  %v269 = vadd.f32 %v198, %v218
  %v270 = vadd.f32 %v199, %v218
  %v271 = vadd.f32 %v200, %v218
  %v272 = vadd.f32 %v201, %v218
  %v273 = vadd.f32 %v202, %v218
  %v274 = vadd.f32 %v203, %v218
  %v275 = vadd.f32 %v204, %v218
  %v276 = vadd.f32 %v205, %v218
  %v277 = vadd.f32 %v206, %v218
  %v278 = vadd.f32 %v207, %v218
  %v279 = vadd.f32 %v208, %v218
  %v280 = vadd.f32 %v209, %v218
  %v281 = vadd.f32 %v210, %v218
  %v282 = vadd.f32 %v211, %v218
  %v283 = vadd.f32 %v212, %v218
  %v284 = vxor.u32 %v220, 2147483648
  %v285 = vxor.u32 %v221, 2147483648
  %v286 = vxor.u32 %v222, 2147483648
  %v287 = vxor.u32 %v223, 2147483648
  %v288 = vxor.u32 %v224, 2147483648
  %v289 = vxor.u32 %v225, 2147483648
  %v290 = vxor.u32 %v226, 2147483648
  %v291 = vxor.u32 %v227, 2147483648
  %v292 = vxor.u32 %v228, 2147483648
  %v293 = vxor.u32 %v229, 2147483648
  %v294 = vxor.u32 %v230, 2147483648
  %v295 = vxor.u32 %v231, 2147483648
  %v296 = vxor.u32 %v232, 2147483648
  %v297 = vxor.u32 %v233, 2147483648
  %v298 = vxor.u32 %v234, 2147483648
  %v299 = vxor.u32 %v235, 2147483648
  %v300 = vxor.u32 %v236, 2147483648
  %v301 = vxor.u32 %v237, 2147483648
  %v302 = vxor.u32 %v238, 2147483648
  %v303 = vxor.u32 %v239, 2147483648
  %v304 = vxor.u32 %v240, 2147483648
  %v305 = vxor.u32 %v241, 2147483648
  %v306 = vxor.u32 %v242, 2147483648
  %v307 = vxor.u32 %v243, 2147483648
  %v308 = vxor.u32 %v244, 2147483648
  %v309 = vxor.u32 %v245, 2147483648
  %v310 = vxor.u32 %v246, 2147483648
  %v311 = vxor.u32 %v247, 2147483648
  %v312 = vxor.u32 %v248, 2147483648
  %v313 = vxor.u32 %v249, 2147483648
  %v314 = vxor.u32 %v250, 2147483648
  %v315 = vxor.u32 %v251, 2147483648
  %v316 = vxor.u32 %v252, 2147483648
  %v317 = vxor.u32 %v253, 2147483648
  %v318 = vxor.u32 %v254, 2147483648
  %v319 = vxor.u32 %v255, 2147483648
  %v320 = vxor.u32 %v256, 2147483648
  %v321 = vxor.u32 %v257, 2147483648
  %v322 = vxor.u32 %v258, 2147483648
  %v323 = vxor.u32 %v259, 2147483648
  %v324 = vxor.u32 %v260, 2147483648
  %v325 = vxor.u32 %v261, 2147483648
  %v326 = vxor.u32 %v262, 2147483648
  %v327 = vxor.u32 %v263, 2147483648
  %v328 = vxor.u32 %v264, 2147483648
  %v329 = vxor.u32 %v265, 2147483648
  %v330 = vxor.u32 %v266, 2147483648
  %v331 = vxor.u32 %v267, 2147483648
  %v332 = vxor.u32 %v268, 2147483648
  %v333 = vxor.u32 %v269, 2147483648
  %v334 = vxor.u32 %v270, 2147483648
  %v335 = vxor.u32 %v271, 2147483648
  %v336 = vxor.u32 %v272, 2147483648
  %v337 = vxor.u32 %v273, 2147483648
  %v338 = vxor.u32 %v274, 2147483648
  %v339 = vxor.u32 %v275, 2147483648
  %v340 = vxor.u32 %v276, 2147483648
  %v341 = vxor.u32 %v277, 2147483648
  %v342 = vxor.u32 %v278, 2147483648
  %v343 = vxor.u32 %v279, 2147483648
  %v344 = vxor.u32 %v280, 2147483648
  %v345 = vxor.u32 %v281, 2147483648
  %v346 = vxor.u32 %v282, 2147483648
  %v347 = vxor.u32 %v283, 2147483648
  %v348 = vmul.f32 %v284, 1.442695
  %v349 = vpow.pop %v348
  %v350 = vmul.f32 %v285, 1.442695
  %v351 = vpow.pop %v350
  %v352 = vmul.f32 %v286, 1.442695
  %v353 = vpow.pop %v352
  %v354 = vmul.f32 %v287, 1.442695
  %v355 = vpow.pop %v354
  %v356 = vmul.f32 %v288, 1.442695
  %v357 = vpow.pop %v356
  %v358 = vmul.f32 %v289, 1.442695
  %v359 = vpow.pop %v358
  %v360 = vmul.f32 %v290, 1.442695
  %v361 = vpow.pop %v360
  %v362 = vmul.f32 %v291, 1.442695
  %v363 = vpow.pop %v362
  %v364 = vmul.f32 %v292, 1.442695
  %v365 = vpow.pop %v364
  %v366 = vmul.f32 %v293, 1.442695
  %v367 = vpow.pop %v366
  %v368 = vmul.f32 %v294, 1.442695
  %v369 = vpow.pop %v368
  %v370 = vmul.f32 %v295, 1.442695
  %v371 = vpow.pop %v370
  %v372 = vmul.f32 %v296, 1.442695
  %v373 = vpow.pop %v372
  %v374 = vmul.f32 %v297, 1.442695
  %v375 = vpow.pop %v374
  %v376 = vmul.f32 %v298, 1.442695
  %v377 = vpow.pop %v376
  %v378 = vmul.f32 %v299, 1.442695
  %v379 = vpow.pop %v378
  %v380 = vmul.f32 %v300, 1.442695
  %v381 = vpow.pop %v380
  %v382 = vmul.f32 %v301, 1.442695
  %v383 = vpow.pop %v382
  %v384 = vmul.f32 %v302, 1.442695
  %v385 = vpow.pop %v384
  %v386 = vmul.f32 %v303, 1.442695
  %v387 = vpow.pop %v386
  %v388 = vmul.f32 %v304, 1.442695
  %v389 = vpow.pop %v388
  %v390 = vmul.f32 %v305, 1.442695
  %v391 = vpow.pop %v390
  %v392 = vmul.f32 %v306, 1.442695
  %v393 = vpow.pop %v392
  %v394 = vmul.f32 %v307, 1.442695
  %v395 = vpow.pop %v394
  %v396 = vmul.f32 %v308, 1.442695
  %v397 = vpow.pop %v396
  %v398 = vmul.f32 %v309, 1.442695
  %v399 = vpow.pop %v398
  %v400 = vmul.f32 %v310, 1.442695
  %v401 = vpow.pop %v400
  %v402 = vmul.f32 %v311, 1.442695
  %v403 = vpow.pop %v402
  %v404 = vmul.f32 %v312, 1.442695
  %v405 = vpow.pop %v404
  %v406 = vmul.f32 %v313, 1.442695
  %v407 = vpow.pop %v406
  %v408 = vmul.f32 %v314, 1.442695
  %v409 = vpow.pop %v408
  %v410 = vmul.f32 %v315, 1.442695
  %v411 = vpow.pop %v410
  %v412 = vmul.f32 %v316, 1.442695
  %v413 = vpow.pop %v412
  %v414 = vmul.f32 %v317, 1.442695
  %v415 = vpow.pop %v414
  %v416 = vmul.f32 %v318, 1.442695
  %v417 = vpow.pop %v416
  %v418 = vmul.f32 %v319, 1.442695
  %v419 = vpow.pop %v418
  %v420 = vmul.f32 %v320, 1.442695
  %v421 = vpow.pop %v420
  %v422 = vmul.f32 %v321, 1.442695
  %v423 = vpow.pop %v422
  %v424 = vmul.f32 %v322, 1.442695
  %v425 = vpow.pop %v424
  %v426 = vmul.f32 %v323, 1.442695
  %v427 = vpow.pop %v426
  %v428 = vmul.f32 %v324, 1.442695
  %v429 = vpow.pop %v428
  %v430 = vmul.f32 %v325, 1.442695
  %v431 = vpow.pop %v430
  %v432 = vmul.f32 %v326, 1.442695
  %v433 = vpow.pop %v432
  %v434 = vmul.f32 %v327, 1.442695
  %v435 = vpow.pop %v434
  %v436 = vmul.f32 %v328, 1.442695
  %v437 = vpow.pop %v436
  %v438 = vmul.f32 %v329, 1.442695
  %v439 = vpow.pop %v438
  %v440 = vmul.f32 %v330, 1.442695
  %v441 = vpow.pop %v440
  %v442 = vmul.f32 %v331, 1.442695
  %v443 = vpow.pop %v442
  %v444 = vmul.f32 %v332, 1.442695
  %v445 = vpow.pop %v444
  %v446 = vmul.f32 %v333, 1.442695
  %v447 = vpow.pop %v446
  %v448 = vmul.f32 %v334, 1.442695
  %v449 = vpow.pop %v448
  %v450 = vmul.f32 %v335, 1.442695
  %v451 = vpow.pop %v450
  %v452 = vmul.f32 %v336, 1.442695
  %v453 = vpow.pop %v452
  %v454 = vmul.f32 %v337, 1.442695
  %v455 = vpow.pop %v454
  %v456 = vmul.f32 %v338, 1.442695
  %v457 = vpow.pop %v456
  %v458 = vmul.f32 %v339, 1.442695
  %v459 = vpow.pop %v458
  %v460 = vmul.f32 %v340, 1.442695
  %v461 = vpow.pop %v460
  %v462 = vmul.f32 %v341, 1.442695
  %v463 = vpow.pop %v462
  %v464 = vmul.f32 %v342, 1.442695
  %v465 = vpow.pop %v464
  %v466 = vmul.f32 %v343, 1.442695
  %v467 = vpow.pop %v466
  %v468 = vmul.f32 %v344, 1.442695
  %v469 = vpow.pop %v468
  %v470 = vmul.f32 %v345, 1.442695
  %v471 = vpow.pop %v470
  %v472 = vmul.f32 %v346, 1.442695
  %v473 = vpow.pop %v472
  %v474 = vmul.f32 %v347, 1.442695
  %v475 = vpow.pop %v474
  %v476 = vadd.f32 %v349, 1.0
  %v477 = vadd.f32 %v351, 1.0
  %v478 = vadd.f32 %v353, 1.0
  %v479 = vadd.f32 %v355, 1.0
  %v480 = vadd.f32 %v357, 1.0
  %v481 = vadd.f32 %v359, 1.0
  %v482 = vadd.f32 %v361, 1.0
  %v483 = vadd.f32 %v363, 1.0
  %v484 = vadd.f32 %v365, 1.0
  %v485 = vadd.f32 %v367, 1.0
  %v486 = vadd.f32 %v369, 1.0
  %v487 = vadd.f32 %v371, 1.0
  %v488 = vadd.f32 %v373, 1.0
  %v489 = vadd.f32 %v375, 1.0
  %v490 = vadd.f32 %v377, 1.0
  %v491 = vadd.f32 %v379, 1.0
  %v492 = vadd.f32 %v381, 1.0
  %v493 = vadd.f32 %v383, 1.0
  %v494 = vadd.f32 %v385, 1.0
  %v495 = vadd.f32 %v387, 1.0
  %v496 = vadd.f32 %v389, 1.0
  %v497 = vadd.f32 %v391, 1.0
  %v498 = vadd.f32 %v393, 1.0
  %v499 = vadd.f32 %v395, 1.0
  %v500 = vadd.f32 %v397, 1.0
  %v501 = vadd.f32 %v399, 1.0
  %v502 = vadd.f32 %v401, 1.0
  %v503 = vadd.f32 %v403, 1.0
  %v504 = vadd.f32 %v405, 1.0
  %v505 = vadd.f32 %v407, 1.0
  %v506 = vadd.f32 %v409, 1.0
  %v507 = vadd.f32 %v411, 1.0
  %v508 = vadd.f32 %v413, 1.0
  %v509 = vadd.f32 %v415, 1.0
  %v510 = vadd.f32 %v417, 1.0
  %v511 = vadd.f32 %v419, 1.0
  %v512 = vadd.f32 %v421, 1.0
  %v513 = vadd.f32 %v423, 1.0
  %v514 = vadd.f32 %v425, 1.0
  %v515 = vadd.f32 %v427, 1.0
  %v516 = vadd.f32 %v429, 1.0
  %v517 = vadd.f32 %v431, 1.0
  %v518 = vadd.f32 %v433, 1.0
  %v519 = vadd.f32 %v435, 1.0
  %v520 = vadd.f32 %v437, 1.0
  %v521 = vadd.f32 %v439, 1.0
  %v522 = vadd.f32 %v441, 1.0
  %v523 = vadd.f32 %v443, 1.0
  %v524 = vadd.f32 %v445, 1.0
  %v525 = vadd.f32 %v447, 1.0
  %v526 = vadd.f32 %v449, 1.0
  %v527 = vadd.f32 %v451, 1.0
  %v528 = vadd.f32 %v453, 1.0
  %v529 = vadd.f32 %v455, 1.0
  %v530 = vadd.f32 %v457, 1.0
  %v531 = vadd.f32 %v459, 1.0
  %v532 = vadd.f32 %v461, 1.0
  %v533 = vadd.f32 %v463, 1.0
  %v534 = vadd.f32 %v465, 1.0
  %v535 = vadd.f32 %v467, 1.0
  %v536 = vadd.f32 %v469, 1.0
  %v537 = vadd.f32 %v471, 1.0
  %v538 = vadd.f32 %v473, 1.0
  %v539 = vadd.f32 %v475, 1.0
  %v540 = vrcp.pop %v476
  %v541 = vmul.f32 1.0, %v540
  %v542 = vrcp.pop %v477
  %v543 = vmul.f32 1.0, %v542
  %v544 = vrcp.pop %v478
  %v545 = vmul.f32 1.0, %v544
  %v546 = vrcp.pop %v479
  %v547 = vmul.f32 1.0, %v546
  %v548 = vrcp.pop %v480
  %v549 = vmul.f32 1.0, %v548
  %v550 = vrcp.pop %v481
  %v551 = vmul.f32 1.0, %v550
  %v552 = vrcp.pop %v482
  %v553 = vmul.f32 1.0, %v552
  %v554 = vrcp.pop %v483
  %v555 = vmul.f32 1.0, %v554
  %v556 = vrcp.pop %v484
  %v557 = vmul.f32 1.0, %v556
  %v558 = vrcp.pop %v485
  %v559 = vmul.f32 1.0, %v558
  %v560 = vrcp.pop %v486
  %v561 = vmul.f32 1.0, %v560
  %v562 = vrcp.pop %v487
  %v563 = vmul.f32 1.0, %v562
  %v564 = vrcp.pop %v488
  %v565 = vmul.f32 1.0, %v564
  %v566 = vrcp.pop %v489
  %v567 = vmul.f32 1.0, %v566
  %v568 = vrcp.pop %v490
  %v569 = vmul.f32 1.0, %v568
  %v570 = vrcp.pop %v491
  %v571 = vmul.f32 1.0, %v570
  %v572 = vrcp.pop %v492
  %v573 = vmul.f32 1.0, %v572
  %v574 = vrcp.pop %v493
  %v575 = vmul.f32 1.0, %v574
  %v576 = vrcp.pop %v494
  %v577 = vmul.f32 1.0, %v576
  %v578 = vrcp.pop %v495
  %v579 = vmul.f32 1.0, %v578
  %v580 = vrcp.pop %v496
  %v581 = vmul.f32 1.0, %v580
  %v582 = vrcp.pop %v497
  %v583 = vmul.f32 1.0, %v582
  %v584 = vrcp.pop %v498
  %v585 = vmul.f32 1.0, %v584
  %v586 = vrcp.pop %v499
  %v587 = vmul.f32 1.0, %v586
  %v588 = vrcp.pop %v500
  %v589 = vmul.f32 1.0, %v588
  %v590 = vrcp.pop %v501
  %v591 = vmul.f32 1.0, %v590
  %v592 = vrcp.pop %v502
  %v593 = vmul.f32 1.0, %v592
  %v594 = vrcp.pop %v503
  %v595 = vmul.f32 1.0, %v594
  %v596 = vrcp.pop %v504
  %v597 = vmul.f32 1.0, %v596
  %v598 = vrcp.pop %v505
  %v599 = vmul.f32 1.0, %v598
  %v600 = vrcp.pop %v506
  %v601 = vmul.f32 1.0, %v600
  %v602 = vrcp.pop %v507
  %v603 = vmul.f32 1.0, %v602
  %v604 = vrcp.pop %v508
  %v605 = vmul.f32 1.0, %v604
  %v606 = vrcp.pop %v509
  %v607 = vmul.f32 1.0, %v606
  %v608 = vrcp.pop %v510
  %v609 = vmul.f32 1.0, %v608
  %v610 = vrcp.pop %v511
  %v611 = vmul.f32 1.0, %v610
  %v612 = vrcp.pop %v512
  %v613 = vmul.f32 1.0, %v612
  %v614 = vrcp.pop %v513
  %v615 = vmul.f32 1.0, %v614
  %v616 = vrcp.pop %v514
  %v617 = vmul.f32 1.0, %v616
  %v618 = vrcp.pop %v515
  %v619 = vmul.f32 1.0, %v618
  %v620 = vrcp.pop %v516
  %v621 = vmul.f32 1.0, %v620
  %v622 = vrcp.pop %v517
  %v623 = vmul.f32 1.0, %v622
  %v624 = vrcp.pop %v518
  %v625 = vmul.f32 1.0, %v624
  %v626 = vrcp.pop %v519
  %v627 = vmul.f32 1.0, %v626
  %v628 = vrcp.pop %v520
  %v629 = vmul.f32 1.0, %v628
  %v630 = vrcp.pop %v521
  %v631 = vmul.f32 1.0, %v630
  %v632 = vrcp.pop %v522
  %v633 = vmul.f32 1.0, %v632
  %v634 = vrcp.pop %v523
  %v635 = vmul.f32 1.0, %v634
  %v636 = vrcp.pop %v524
  %v637 = vmul.f32 1.0, %v636
  %v638 = vrcp.pop %v525
  %v639 = vmul.f32 1.0, %v638
  %v640 = vrcp.pop %v526
  %v641 = vmul.f32 1.0, %v640
  %v642 = vrcp.pop %v527
  %v643 = vmul.f32 1.0, %v642
  %v644 = vrcp.pop %v528
  %v645 = vmul.f32 1.0, %v644
  %v646 = vrcp.pop %v529
  %v647 = vmul.f32 1.0, %v646
  %v648 = vrcp.pop %v530
  %v649 = vmul.f32 1.0, %v648
  %v650 = vrcp.pop %v531
  %v651 = vmul.f32 1.0, %v650
  %v652 = vrcp.pop %v532
  %v653 = vmul.f32 1.0, %v652
  %v654 = vrcp.pop %v533
  %v655 = vmul.f32 1.0, %v654
  %v656 = vrcp.pop %v534
  %v657 = vmul.f32 1.0, %v656
  %v658 = vrcp.pop %v535
  %v659 = vmul.f32 1.0, %v658
  %v660 = vrcp.pop %v536
  %v661 = vmul.f32 1.0, %v660
  %v662 = vrcp.pop %v537
  %v663 = vmul.f32 1.0, %v662
  %v664 = vrcp.pop %v538
  %v665 = vmul.f32 1.0, %v664
  %v666 = vrcp.pop %v539
  %v667 = vmul.f32 1.0, %v666
  %v668 = vmul.f32 %v220, %v541
  %v669 = vmul.f32 %v221, %v543
  %v670 = vmul.f32 %v222, %v545
  %v671 = vmul.f32 %v223, %v547
  %v672 = vmul.f32 %v224, %v549
  %v673 = vmul.f32 %v225, %v551
  %v674 = vmul.f32 %v226, %v553
  %v675 = vmul.f32 %v227, %v555
  %v676 = vmul.f32 %v228, %v557
  %v677 = vmul.f32 %v229, %v559
  %v678 = vmul.f32 %v230, %v561
  %v679 = vmul.f32 %v231, %v563
  %v680 = vmul.f32 %v232, %v565
  %v681 = vmul.f32 %v233, %v567
  %v682 = vmul.f32 %v234, %v569
  %v683 = vmul.f32 %v235, %v571
  %v684 = vmul.f32 %v236, %v573
  %v685 = vmul.f32 %v237, %v575
  %v686 = vmul.f32 %v238, %v577
  %v687 = vmul.f32 %v239, %v579
  %v688 = vmul.f32 %v240, %v581
  %v689 = vmul.f32 %v241, %v583
  %v690 = vmul.f32 %v242, %v585
  %v691 = vmul.f32 %v243, %v587
  %v692 = vmul.f32 %v244, %v589
  %v693 = vmul.f32 %v245, %v591
  %v694 = vmul.f32 %v246, %v593
  %v695 = vmul.f32 %v247, %v595
  %v696 = vmul.f32 %v248, %v597
  %v697 = vmul.f32 %v249, %v599
  %v698 = vmul.f32 %v250, %v601
  %v699 = vmul.f32 %v251, %v603
  %v700 = vmul.f32 %v252, %v605
  %v701 = vmul.f32 %v253, %v607
  %v702 = vmul.f32 %v254, %v609
  %v703 = vmul.f32 %v255, %v611
  %v704 = vmul.f32 %v256, %v613
  %v705 = vmul.f32 %v257, %v615
  %v706 = vmul.f32 %v258, %v617
  %v707 = vmul.f32 %v259, %v619
  %v708 = vmul.f32 %v260, %v621
  %v709 = vmul.f32 %v261, %v623
  %v710 = vmul.f32 %v262, %v625
  %v711 = vmul.f32 %v263, %v627
  %v712 = vmul.f32 %v264, %v629
  %v713 = vmul.f32 %v265, %v631
  %v714 = vmul.f32 %v266, %v633
  %v715 = vmul.f32 %v267, %v635
  %v716 = vmul.f32 %v268, %v637
  %v717 = vmul.f32 %v269, %v639
  %v718 = vmul.f32 %v270, %v641
  %v719 = vmul.f32 %v271, %v643
  %v720 = vmul.f32 %v272, %v645
  %v721 = vmul.f32 %v273, %v647
  %v722 = vmul.f32 %v274, %v649
  %v723 = vmul.f32 %v275, %v651
  %v724 = vmul.f32 %v276, %v653
  %v725 = vmul.f32 %v277, %v655
  %v726 = vmul.f32 %v278, %v657
  %v727 = vmul.f32 %v279, %v659
  %v728 = vmul.f32 %v280, %v661
  %v729 = vmul.f32 %v281, %v663
  %v730 = vmul.f32 %v282, %v665
  %v731 = vmul.f32 %v283, %v667
  %v732 = vpack.c.bf16 %v669, %v668
  %v733 = vpack.c.bf16 %v671, %v670
  %v734 = vpack.c.bf16 %v673, %v672
  %v735 = vpack.c.bf16 %v675, %v674
  %v736 = vpack.c.bf16 %v677, %v676
  %v737 = vpack.c.bf16 %v679, %v678
  %v738 = vpack.c.bf16 %v681, %v680
  %v739 = vpack.c.bf16 %v683, %v682
  %v740 = vpack.c.bf16 %v685, %v684
  %v741 = vpack.c.bf16 %v687, %v686
  %v742 = vpack.c.bf16 %v689, %v688
  %v743 = vpack.c.bf16 %v691, %v690
  %v744 = vpack.c.bf16 %v693, %v692
  %v745 = vpack.c.bf16 %v695, %v694
  %v746 = vpack.c.bf16 %v697, %v696
  %v747 = vpack.c.bf16 %v699, %v698
  %v748 = vpack.c.bf16 %v701, %v700
  %v749 = vpack.c.bf16 %v703, %v702
  %v750 = vpack.c.bf16 %v705, %v704
  %v751 = vpack.c.bf16 %v707, %v706
  %v752 = vpack.c.bf16 %v709, %v708
  %v753 = vpack.c.bf16 %v711, %v710
  %v754 = vpack.c.bf16 %v713, %v712
  %v755 = vpack.c.bf16 %v715, %v714
  %v756 = vpack.c.bf16 %v717, %v716
  %v757 = vpack.c.bf16 %v719, %v718
  %v758 = vpack.c.bf16 %v721, %v720
  %v759 = vpack.c.bf16 %v723, %v722
  %v760 = vpack.c.bf16 %v725, %v724
  %v761 = vpack.c.bf16 %v727, %v726
  %v762 = vpack.c.bf16 %v729, %v728
  %v763 = vpack.c.bf16 %v731, %v730
  %v796 = vunpack.c.l.b16 %v732
  %v797 = vunpack.c.h.b16 %v732
  %v798 = vunpack.c.l.b16 %v733
  %v799 = vunpack.c.h.b16 %v733
  %v800 = vunpack.c.l.b16 %v734
  %v801 = vunpack.c.h.b16 %v734
  %v802 = vunpack.c.l.b16 %v735
  %v803 = vunpack.c.h.b16 %v735
  %v804 = vunpack.c.l.b16 %v736
  %v805 = vunpack.c.h.b16 %v736
  %v806 = vunpack.c.l.b16 %v737
  %v807 = vunpack.c.h.b16 %v737
  %v808 = vunpack.c.l.b16 %v738
  %v809 = vunpack.c.h.b16 %v738
  %v810 = vunpack.c.l.b16 %v739
  %v811 = vunpack.c.h.b16 %v739
  %v812 = vunpack.c.l.b16 %v740
  %v813 = vunpack.c.h.b16 %v740
  %v814 = vunpack.c.l.b16 %v741
  %v815 = vunpack.c.h.b16 %v741
  %v816 = vunpack.c.l.b16 %v742
  %v817 = vunpack.c.h.b16 %v742
  %v818 = vunpack.c.l.b16 %v743
  %v819 = vunpack.c.h.b16 %v743
  %v820 = vunpack.c.l.b16 %v744
  %v821 = vunpack.c.h.b16 %v744
  %v822 = vunpack.c.l.b16 %v745
  %v823 = vunpack.c.h.b16 %v745
  %v824 = vunpack.c.l.b16 %v746
  %v825 = vunpack.c.h.b16 %v746
  %v826 = vunpack.c.l.b16 %v747
  %v827 = vunpack.c.h.b16 %v747
  %v828 = vunpack.c.l.b16 %v748
  %v829 = vunpack.c.h.b16 %v748
  %v830 = vunpack.c.l.b16 %v749
  %v831 = vunpack.c.h.b16 %v749
  %v832 = vunpack.c.l.b16 %v750
  %v833 = vunpack.c.h.b16 %v750
  %v834 = vunpack.c.l.b16 %v751
  %v835 = vunpack.c.h.b16 %v751
  %v836 = vunpack.c.l.b16 %v752
  %v837 = vunpack.c.h.b16 %v752
  %v838 = vunpack.c.l.b16 %v753
  %v839 = vunpack.c.h.b16 %v753
  %v840 = vunpack.c.l.b16 %v754
  %v841 = vunpack.c.h.b16 %v754
  %v842 = vunpack.c.l.b16 %v755
  %v843 = vunpack.c.h.b16 %v755
  %v844 = vunpack.c.l.b16 %v756
  %v845 = vunpack.c.h.b16 %v756
  %v846 = vunpack.c.l.b16 %v757
  %v847 = vunpack.c.h.b16 %v757
  %v848 = vunpack.c.l.b16 %v758
  %v849 = vunpack.c.h.b16 %v758
  %v850 = vunpack.c.l.b16 %v759
  %v851 = vunpack.c.h.b16 %v759
  %v852 = vunpack.c.l.b16 %v760
  %v853 = vunpack.c.h.b16 %v760
  %v854 = vunpack.c.l.b16 %v761
  %v855 = vunpack.c.h.b16 %v761
  %v856 = vunpack.c.l.b16 %v762
  %v857 = vunpack.c.h.b16 %v762
  %v858 = vunpack.c.l.b16 %v763
  %v859 = vunpack.c.h.b16 %v763
  %v860 = vpack.c.b16 %v796, %v796
  %v861 = vpack.c.b16 %v797, %v797
  %v862 = vpack.c.b16 %v798, %v798
  %v863 = vpack.c.b16 %v799, %v799
  %v864 = vpack.c.b16 %v800, %v800
  %v865 = vpack.c.b16 %v801, %v801
  %v866 = vpack.c.b16 %v802, %v802
  %v867 = vpack.c.b16 %v803, %v803
  %v868 = vpack.c.b16 %v804, %v804
  %v869 = vpack.c.b16 %v805, %v805
  %v870 = vpack.c.b16 %v806, %v806
  %v871 = vpack.c.b16 %v807, %v807
  %v872 = vpack.c.b16 %v808, %v808
  %v873 = vpack.c.b16 %v809, %v809
  %v874 = vpack.c.b16 %v810, %v810
  %v875 = vpack.c.b16 %v811, %v811
  %v876 = vpack.c.b16 %v812, %v812
  %v877 = vpack.c.b16 %v813, %v813
  %v878 = vpack.c.b16 %v814, %v814
  %v879 = vpack.c.b16 %v815, %v815
  %v880 = vpack.c.b16 %v816, %v816
  %v881 = vpack.c.b16 %v817, %v817
  %v882 = vpack.c.b16 %v818, %v818
  %v883 = vpack.c.b16 %v819, %v819
  %v884 = vpack.c.b16 %v820, %v820
  %v885 = vpack.c.b16 %v821, %v821
  %v886 = vpack.c.b16 %v822, %v822
  %v887 = vpack.c.b16 %v823, %v823
  %v888 = vpack.c.b16 %v824, %v824
  %v889 = vpack.c.b16 %v825, %v825
  %v890 = vpack.c.b16 %v826, %v826
  %v891 = vpack.c.b16 %v827, %v827
  %v892 = vpack.c.b16 %v828, %v828
  %v893 = vpack.c.b16 %v829, %v829
  %v894 = vpack.c.b16 %v830, %v830
  %v895 = vpack.c.b16 %v831, %v831
  %v896 = vpack.c.b16 %v832, %v832
  %v897 = vpack.c.b16 %v833, %v833
  %v898 = vpack.c.b16 %v834, %v834
  %v899 = vpack.c.b16 %v835, %v835
  %v900 = vpack.c.b16 %v836, %v836
  %v901 = vpack.c.b16 %v837, %v837
  %v902 = vpack.c.b16 %v838, %v838
  %v903 = vpack.c.b16 %v839, %v839
  %v904 = vpack.c.b16 %v840, %v840
  %v905 = vpack.c.b16 %v841, %v841
  %v906 = vpack.c.b16 %v842, %v842
  %v907 = vpack.c.b16 %v843, %v843
  %v908 = vpack.c.b16 %v844, %v844
  %v909 = vpack.c.b16 %v845, %v845
  %v910 = vpack.c.b16 %v846, %v846
  %v911 = vpack.c.b16 %v847, %v847
  %v912 = vpack.c.b16 %v848, %v848
  %v913 = vpack.c.b16 %v849, %v849
  %v914 = vpack.c.b16 %v850, %v850
  %v915 = vpack.c.b16 %v851, %v851
  %v916 = vpack.c.b16 %v852, %v852
  %v917 = vpack.c.b16 %v853, %v853
  %v918 = vpack.c.b16 %v854, %v854
  %v919 = vpack.c.b16 %v855, %v855
  %v920 = vpack.c.b16 %v856, %v856
  %v921 = vpack.c.b16 %v857, %v857
  %v922 = vpack.c.b16 %v858, %v858
  %v923 = vpack.c.b16 %v859, %v859
  %988 = vst [vmem:[%s3] sm:$0xf] %v860
  %989 = vst [vmem:[%s3 + $0x4] sm:$0xf] %v861
  %990 = vst [vmem:[%s3 + $0x8] sm:$0xf] %v862
  %991 = vst [vmem:[%s3 + $0xc] sm:$0xf] %v863
  %992 = vst [vmem:[%s3 + $0x10] sm:$0xf] %v864
  %993 = vst [vmem:[%s3 + $0x14] sm:$0xf] %v865
  %994 = vst [vmem:[%s3 + $0x18] sm:$0xf] %v866
  %995 = vst [vmem:[%s3 + $0x1c] sm:$0xf] %v867
  %996 = vst [vmem:[%s3 + $0x20] sm:$0xf] %v868
  %997 = vst [vmem:[%s3 + $0x24] sm:$0xf] %v869
  %998 = vst [vmem:[%s3 + $0x28] sm:$0xf] %v870
  %999 = vst [vmem:[%s3 + $0x2c] sm:$0xf] %v871
  %1000 = vst [vmem:[%s3 + $0x30] sm:$0xf] %v872
  %1001 = vst [vmem:[%s3 + $0x34] sm:$0xf] %v873
  %1002 = vst [vmem:[%s3 + $0x38] sm:$0xf] %v874
  %1003 = vst [vmem:[%s3 + $0x3c] sm:$0xf] %v875
  %1004 = vst [vmem:[%s3 + $0x40] sm:$0xf] %v876
  %1005 = vst [vmem:[%s3 + $0x44] sm:$0xf] %v877
  %1006 = vst [vmem:[%s3 + $0x48] sm:$0xf] %v878
  %1007 = vst [vmem:[%s3 + $0x4c] sm:$0xf] %v879
  %1008 = vst [vmem:[%s3 + $0x50] sm:$0xf] %v880
  %1009 = vst [vmem:[%s3 + $0x54] sm:$0xf] %v881
  %1010 = vst [vmem:[%s3 + $0x58] sm:$0xf] %v882
  %1011 = vst [vmem:[%s3 + $0x5c] sm:$0xf] %v883
  %1012 = vst [vmem:[%s3 + $0x60] sm:$0xf] %v884
  %1013 = vst [vmem:[%s3 + $0x64] sm:$0xf] %v885
  %1014 = vst [vmem:[%s3 + $0x68] sm:$0xf] %v886
  %1015 = vst [vmem:[%s3 + $0x6c] sm:$0xf] %v887
  %1016 = vst [vmem:[%s3 + $0x70] sm:$0xf] %v888
  %1017 = vst [vmem:[%s3 + $0x74] sm:$0xf] %v889
  %1018 = vst [vmem:[%s3 + $0x78] sm:$0xf] %v890
  %1019 = vst [vmem:[%s3 + $0x7c] sm:$0xf] %v891
  %1020 = vst [vmem:[%s3 + $0x80] sm:$0xf] %v892
  %1021 = vst [vmem:[%s3 + $0x84] sm:$0xf] %v893
  %1022 = vst [vmem:[%s3 + $0x88] sm:$0xf] %v894
  %1023 = vst [vmem:[%s3 + $0x8c] sm:$0xf] %v895
  %1024 = vst [vmem:[%s3 + $0x90] sm:$0xf] %v896
  %1025 = vst [vmem:[%s3 + $0x94] sm:$0xf] %v897
  %1026 = vst [vmem:[%s3 + $0x98] sm:$0xf] %v898
  %1027 = vst [vmem:[%s3 + $0x9c] sm:$0xf] %v899
  %1028 = vst [vmem:[%s3 + $0xa0] sm:$0xf] %v900
  %1029 = vst [vmem:[%s3 + $0xa4] sm:$0xf] %v901
  %1030 = vst [vmem:[%s3 + $0xa8] sm:$0xf] %v902
  %1031 = vst [vmem:[%s3 + $0xac] sm:$0xf] %v903
  %1032 = vst [vmem:[%s3 + $0xb0] sm:$0xf] %v904
  %1033 = vst [vmem:[%s3 + $0xb4] sm:$0xf] %v905
  %1034 = vst [vmem:[%s3 + $0xb8] sm:$0xf] %v906
  %1035 = vst [vmem:[%s3 + $0xbc] sm:$0xf] %v907
  %1036 = vst [vmem:[%s3 + $0xc0] sm:$0xf] %v908
  %1037 = vst [vmem:[%s3 + $0xc4] sm:$0xf] %v909
  %1038 = vst [vmem:[%s3 + $0xc8] sm:$0xf] %v910
  %1039 = vst [vmem:[%s3 + $0xcc] sm:$0xf] %v911
  %1040 = vst [vmem:[%s3 + $0xd0] sm:$0xf] %v912
  %1041 = vst [vmem:[%s3 + $0xd4] sm:$0xf] %v913
  %1042 = vst [vmem:[%s3 + $0xd8] sm:$0xf] %v914
  %1043 = vst [vmem:[%s3 + $0xdc] sm:$0xf] %v915
  %1044 = vst [vmem:[%s3 + $0xe0] sm:$0xf] %v916
  %1045 = vst [vmem:[%s3 + $0xe4] sm:$0xf] %v917
  %1046 = vst [vmem:[%s3 + $0xe8] sm:$0xf] %v918
  %1047 = vst [vmem:[%s3 + $0xec] sm:$0xf] %v919
  %1048 = vst [vmem:[%s3 + $0xf0] sm:$0xf] %v920
  %1049 = vst [vmem:[%s3 + $0xf4] sm:$0xf] %v921
  %1050 = vst [vmem:[%s3 + $0xf8] sm:$0xf] %v922
  %1051 = vst [vmem:[%s3 + $0xfc] sm:$0xf] %v923
  // Predicated region
  $region14: #{cnn_block_forward.3} parent=0 // pred_check
    _
  $region15: #{cnn_block_forward.3} parent=0 // pred_check_branch
    %1053 = sbr.rel (0) target = $region17
  $region16: #{cnn_block_forward.3} parent=0 // pred_region
    _
  $region17: #{cnn_block_forward.3} parent=0 // pred_fallthru
    _
  // Predicated region
  $region18: #{cnn_block_forward.3} parent=0 // pred_check
    _
  $region19: #{cnn_block_forward.3} parent=0 // pred_check_branch
    %1055 = sbr.rel (0) target = $region21
  $region20: #{cnn_block_forward.3} parent=0 // pred_region
    _
  $region21: #{cnn_block_forward.3} parent=0 // pred_fallthru
    _

// kernel: cnn_block_forward.2
$region0: #{cnn_block_forward.2}
  #allocation0 [shape = 'u32[]', space=smem, size = 0x4, offset = 0x4, fixed_abs, tag = 'smem constant byte address 0x4 - core index']
  #allocation1 [shape = 'u32[144,128]{1,0:T(1,128)}', space=vmem, size = 0x12000, scoped, tag = 'internal scratch']
  #allocation2 [shape = 'f32[512,128]{1,0:T(8,128)}', space=vmem, size = 0x40000, scoped, tag = 'scratch operand']
  %s0 = inlined_call_operand.vmem [shape: bf16[512,36], index: 0, kind: input, shape index: {}]
  %s1 = inlined_call_operand.vmem [shape: bf16[36,128], index: 1, kind: input, shape index: {}]
  %s2 = inlined_call_operand.vmem [shape: bf16[512,128], index: 2, kind: output, shape index: {0}]
  %s3 = inlined_call_operand.vmem [shape: f32[8,128], index: 3, kind: output, shape index: {1}]
  %4 = xla_tuple %s2, %s3
  %s5 = sld [smem:[#allocation0]]
  $region34: #{cnn_block_forward.2} parent=0
    _
  %s7 = ssub.s32 1, %s5
  %s8 = scalar_select 0, %s7, %s5
  // Predicated region
  $region2: #{cnn_block_forward.2} parent=0 // pred_check
    _
  $region3: #{cnn_block_forward.2} parent=0 // pred_check_branch
    %10 = sbr.rel (0) target = $region5
  $region4: #{cnn_block_forward.2} parent=0 // pred_region
    _
  $region5: #{cnn_block_forward.2} parent=0 // pred_fallthru
    _
  // Predicated region
  $region6: #{cnn_block_forward.2} parent=0 // pred_check
    _
  $region7: #{cnn_block_forward.2} parent=0 // pred_check_branch
    %12 = sbr.rel (0) target = $region9
  $region8: #{cnn_block_forward.2} parent=0 // pred_region
    _
  $region9: #{cnn_block_forward.2} parent=0 // pred_fallthru
    _
  %p14 = scmp.eq.s32.totalorder 0, 0
  // Predicated region
  $region10: #{cnn_block_forward.2} parent=0 // pred_check
    %p15 = pneg %p14
  $region11: #{cnn_block_forward.2} parent=0 // pred_check_branch
    %17 = sbr.rel (%p15) target = $region13
  $region12: #{cnn_block_forward.2} parent=0 // pred_region
    %18 = vst [vmem:[#allocation2] sm:$0xff] 0.0
    %19 = vst [vmem:[#allocation2 + $0x8] sm:$0xff] 0.0
    %20 = vst [vmem:[#allocation2 + $0x10] sm:$0xff] 0.0
    %21 = vst [vmem:[#allocation2 + $0x18] sm:$0xff] 0.0
    %22 = vst [vmem:[#allocation2 + $0x20] sm:$0xff] 0.0
    %23 = vst [vmem:[#allocation2 + $0x28] sm:$0xff] 0.0
    %24 = vst [vmem:[#allocation2 + $0x30] sm:$0xff] 0.0
    %25 = vst [vmem:[#allocation2 + $0x38] sm:$0xff] 0.0
    %26 = vst [vmem:[#allocation2 + $0x40] sm:$0xff] 0.0
    %27 = vst [vmem:[#allocation2 + $0x48] sm:$0xff] 0.0
    %28 = vst [vmem:[#allocation2 + $0x50] sm:$0xff] 0.0
    %29 = vst [vmem:[#allocation2 + $0x58] sm:$0xff] 0.0
    %30 = vst [vmem:[#allocation2 + $0x60] sm:$0xff] 0.0
    %31 = vst [vmem:[#allocation2 + $0x68] sm:$0xff] 0.0
    %32 = vst [vmem:[#allocation2 + $0x70] sm:$0xff] 0.0
    %33 = vst [vmem:[#allocation2 + $0x78] sm:$0xff] 0.0
    %34 = vst [vmem:[#allocation2 + $0x80] sm:$0xff] 0.0
    %35 = vst [vmem:[#allocation2 + $0x88] sm:$0xff] 0.0
    %36 = vst [vmem:[#allocation2 + $0x90] sm:$0xff] 0.0
    %37 = vst [vmem:[#allocation2 + $0x98] sm:$0xff] 0.0
    %38 = vst [vmem:[#allocation2 + $0xa0] sm:$0xff] 0.0
    %39 = vst [vmem:[#allocation2 + $0xa8] sm:$0xff] 0.0
    %40 = vst [vmem:[#allocation2 + $0xb0] sm:$0xff] 0.0
    %41 = vst [vmem:[#allocation2 + $0xb8] sm:$0xff] 0.0
    %42 = vst [vmem:[#allocation2 + $0xc0] sm:$0xff] 0.0
    %43 = vst [vmem:[#allocation2 + $0xc8] sm:$0xff] 0.0
    %44 = vst [vmem:[#allocation2 + $0xd0] sm:$0xff] 0.0
    %45 = vst [vmem:[#allocation2 + $0xd8] sm:$0xff] 0.0
    %46 = vst [vmem:[#allocation2 + $0xe0] sm:$0xff] 0.0
    %47 = vst [vmem:[#allocation2 + $0xe8] sm:$0xff] 0.0
    %48 = vst [vmem:[#allocation2 + $0xf0] sm:$0xff] 0.0
    %49 = vst [vmem:[#allocation2 + $0xf8] sm:$0xff] 0.0
    %50 = vst [vmem:[#allocation2 + $0x100] sm:$0xff] 0.0
    %51 = vst [vmem:[#allocation2 + $0x108] sm:$0xff] 0.0
    %52 = vst [vmem:[#allocation2 + $0x110] sm:$0xff] 0.0
    %53 = vst [vmem:[#allocation2 + $0x118] sm:$0xff] 0.0
    %54 = vst [vmem:[#allocation2 + $0x120] sm:$0xff] 0.0
    %55 = vst [vmem:[#allocation2 + $0x128] sm:$0xff] 0.0
    %56 = vst [vmem:[#allocation2 + $0x130] sm:$0xff] 0.0
    %57 = vst [vmem:[#allocation2 + $0x138] sm:$0xff] 0.0
    %58 = vst [vmem:[#allocation2 + $0x140] sm:$0xff] 0.0
    %59 = vst [vmem:[#allocation2 + $0x148] sm:$0xff] 0.0
    %60 = vst [vmem:[#allocation2 + $0x150] sm:$0xff] 0.0
    %61 = vst [vmem:[#allocation2 + $0x158] sm:$0xff] 0.0
    %62 = vst [vmem:[#allocation2 + $0x160] sm:$0xff] 0.0
    %63 = vst [vmem:[#allocation2 + $0x168] sm:$0xff] 0.0
    %64 = vst [vmem:[#allocation2 + $0x170] sm:$0xff] 0.0
    %65 = vst [vmem:[#allocation2 + $0x178] sm:$0xff] 0.0
    %66 = vst [vmem:[#allocation2 + $0x180] sm:$0xff] 0.0
    %67 = vst [vmem:[#allocation2 + $0x188] sm:$0xff] 0.0
    %68 = vst [vmem:[#allocation2 + $0x190] sm:$0xff] 0.0
    %69 = vst [vmem:[#allocation2 + $0x198] sm:$0xff] 0.0
    %70 = vst [vmem:[#allocation2 + $0x1a0] sm:$0xff] 0.0
    %71 = vst [vmem:[#allocation2 + $0x1a8] sm:$0xff] 0.0
    %72 = vst [vmem:[#allocation2 + $0x1b0] sm:$0xff] 0.0
    %73 = vst [vmem:[#allocation2 + $0x1b8] sm:$0xff] 0.0
    %74 = vst [vmem:[#allocation2 + $0x1c0] sm:$0xff] 0.0
    %75 = vst [vmem:[#allocation2 + $0x1c8] sm:$0xff] 0.0
    %76 = vst [vmem:[#allocation2 + $0x1d0] sm:$0xff] 0.0
    %77 = vst [vmem:[#allocation2 + $0x1d8] sm:$0xff] 0.0
    %78 = vst [vmem:[#allocation2 + $0x1e0] sm:$0xff] 0.0
    %79 = vst [vmem:[#allocation2 + $0x1e8] sm:$0xff] 0.0
    %80 = vst [vmem:[#allocation2 + $0x1f0] sm:$0xff] 0.0
    %81 = vst [vmem:[#allocation2 + $0x1f8] sm:$0xff] 0.0
  $region13: #{cnn_block_forward.2} parent=0 // pred_fallthru
    _
  %v82 = vld [vmem:[#allocation2] sm:$0xff]
  %v83 = vld [vmem:[#allocation2 + $0x8] sm:$0xff]
  %v84 = vld [vmem:[#allocation2 + $0x10] sm:$0xff]
  %v85 = vld [vmem:[#allocation2 + $0x18] sm:$0xff]
  %v86 = vld [vmem:[#allocation2 + $0x20] sm:$0xff]
  %v87 = vld [vmem:[#allocation2 + $0x28] sm:$0xff]
  %v88 = vld [vmem:[#allocation2 + $0x30] sm:$0xff]
  %v89 = vld [vmem:[#allocation2 + $0x38] sm:$0xff]
  %v90 = vld [vmem:[#allocation2 + $0x40] sm:$0xff]
  %v91 = vld [vmem:[#allocation2 + $0x48] sm:$0xff]
  %v92 = vld [vmem:[#allocation2 + $0x50] sm:$0xff]
  %v93 = vld [vmem:[#allocation2 + $0x58] sm:$0xff]
  %v94 = vld [vmem:[#allocation2 + $0x60] sm:$0xff]
  %v95 = vld [vmem:[#allocation2 + $0x68] sm:$0xff]
  %v96 = vld [vmem:[#allocation2 + $0x70] sm:$0xff]
  %v97 = vld [vmem:[#allocation2 + $0x78] sm:$0xff]
  %v98 = vld [vmem:[#allocation2 + $0x80] sm:$0xff]
  %v99 = vld [vmem:[#allocation2 + $0x88] sm:$0xff]
  %v100 = vld [vmem:[#allocation2 + $0x90] sm:$0xff]
  %v101 = vld [vmem:[#allocation2 + $0x98] sm:$0xff]
  %v102 = vld [vmem:[#allocation2 + $0xa0] sm:$0xff]
  %v103 = vld [vmem:[#allocation2 + $0xa8] sm:$0xff]
  %v104 = vld [vmem:[#allocation2 + $0xb0] sm:$0xff]
  %v105 = vld [vmem:[#allocation2 + $0xb8] sm:$0xff]
  %v106 = vld [vmem:[#allocation2 + $0xc0] sm:$0xff]
  %v107 = vld [vmem:[#allocation2 + $0xc8] sm:$0xff]
  %v108 = vld [vmem:[#allocation2 + $0xd0] sm:$0xff]
  %v109 = vld [vmem:[#allocation2 + $0xd8] sm:$0xff]
  %v110 = vld [vmem:[#allocation2 + $0xe0] sm:$0xff]
  %v111 = vld [vmem:[#allocation2 + $0xe8] sm:$0xff]
  %v112 = vld [vmem:[#allocation2 + $0xf0] sm:$0xff]
  %v113 = vld [vmem:[#allocation2 + $0xf8] sm:$0xff]
  %v114 = vld [vmem:[#allocation2 + $0x100] sm:$0xff]
  %v115 = vld [vmem:[#allocation2 + $0x108] sm:$0xff]
  %v116 = vld [vmem:[#allocation2 + $0x110] sm:$0xff]
  %v117 = vld [vmem:[#allocation2 + $0x118] sm:$0xff]
  %v118 = vld [vmem:[#allocation2 + $0x120] sm:$0xff]
  %v119 = vld [vmem:[#allocation2 + $0x128] sm:$0xff]
  %v120 = vld [vmem:[#allocation2 + $0x130] sm:$0xff]
  %v121 = vld [vmem:[#allocation2 + $0x138] sm:$0xff]
  %v122 = vld [vmem:[#allocation2 + $0x140] sm:$0xff]
  %v123 = vld [vmem:[#allocation2 + $0x148] sm:$0xff]
  %v124 = vld [vmem:[#allocation2 + $0x150] sm:$0xff]
  %v125 = vld [vmem:[#allocation2 + $0x158] sm:$0xff]
  %v126 = vld [vmem:[#allocation2 + $0x160] sm:$0xff]
  %v127 = vld [vmem:[#allocation2 + $0x168] sm:$0xff]
  %v128 = vld [vmem:[#allocation2 + $0x170] sm:$0xff]
  %v129 = vld [vmem:[#allocation2 + $0x178] sm:$0xff]
  %v130 = vld [vmem:[#allocation2 + $0x180] sm:$0xff]
  %v131 = vld [vmem:[#allocation2 + $0x188] sm:$0xff]
  %v132 = vld [vmem:[#allocation2 + $0x190] sm:$0xff]
  %v133 = vld [vmem:[#allocation2 + $0x198] sm:$0xff]
  %v134 = vld [vmem:[#allocation2 + $0x1a0] sm:$0xff]
  %v135 = vld [vmem:[#allocation2 + $0x1a8] sm:$0xff]
  %v136 = vld [vmem:[#allocation2 + $0x1b0] sm:$0xff]
  %v137 = vld [vmem:[#allocation2 + $0x1b8] sm:$0xff]
  %v138 = vld [vmem:[#allocation2 + $0x1c0] sm:$0xff]
  %v139 = vld [vmem:[#allocation2 + $0x1c8] sm:$0xff]
  %v140 = vld [vmem:[#allocation2 + $0x1d0] sm:$0xff]
  %v141 = vld [vmem:[#allocation2 + $0x1d8] sm:$0xff]
  %v142 = vld [vmem:[#allocation2 + $0x1e0] sm:$0xff]
  %v143 = vld [vmem:[#allocation2 + $0x1e8] sm:$0xff]
  %v144 = vld [vmem:[#allocation2 + $0x1f0] sm:$0xff]
  %v145 = vld [vmem:[#allocation2 + $0x1f8] sm:$0xff]
  %v146 = vld [vmem:[%s0] sm:$0xf]
  %v147 = vld [vmem:[%s0 + $0x4] sm:$0xf]
  %v148 = vld [vmem:[%s0 + $0x8] sm:$0xf]
  %v149 = vld [vmem:[%s0 + $0xc] sm:$0xf]
  %v150 = vld [vmem:[%s0 + $0x10] sm:$0xf]
  %v151 = vld [vmem:[%s0 + $0x14] sm:$0xf]
  %v152 = vld [vmem:[%s0 + $0x18] sm:$0xf]
  %v153 = vld [vmem:[%s0 + $0x1c] sm:$0xf]
  %v154 = vld [vmem:[%s0 + $0x20] sm:$0xf]
  %v155 = vld [vmem:[%s0 + $0x24] sm:$0xf]
  %v156 = vld [vmem:[%s0 + $0x28] sm:$0xf]
  %v157 = vld [vmem:[%s0 + $0x2c] sm:$0xf]
  %v158 = vld [vmem:[%s0 + $0x30] sm:$0xf]
  %v159 = vld [vmem:[%s0 + $0x34] sm:$0xf]
  %v160 = vld [vmem:[%s0 + $0x38] sm:$0xf]
  %v161 = vld [vmem:[%s0 + $0x3c] sm:$0xf]
  %v162 = vld [vmem:[%s0 + $0x40] sm:$0xf]
  %v163 = vld [vmem:[%s0 + $0x44] sm:$0xf]
  %v164 = vld [vmem:[%s0 + $0x48] sm:$0xf]
  %v165 = vld [vmem:[%s0 + $0x4c] sm:$0xf]
  %v166 = vld [vmem:[%s0 + $0x50] sm:$0xf]
  %v167 = vld [vmem:[%s0 + $0x54] sm:$0xf]
  %v168 = vld [vmem:[%s0 + $0x58] sm:$0xf]
  %v169 = vld [vmem:[%s0 + $0x5c] sm:$0xf]
  %v170 = vld [vmem:[%s0 + $0x60] sm:$0xf]
  %v171 = vld [vmem:[%s0 + $0x64] sm:$0xf]
  %v172 = vld [vmem:[%s0 + $0x68] sm:$0xf]
  %v173 = vld [vmem:[%s0 + $0x6c] sm:$0xf]
  %v174 = vld [vmem:[%s0 + $0x70] sm:$0xf]
  %v175 = vld [vmem:[%s0 + $0x74] sm:$0xf]
  %v176 = vld [vmem:[%s0 + $0x78] sm:$0xf]
  %v177 = vld [vmem:[%s0 + $0x7c] sm:$0xf]
  %v178 = vld [vmem:[%s0 + $0x80] sm:$0xf]
  %v179 = vld [vmem:[%s0 + $0x84] sm:$0xf]
  %v180 = vld [vmem:[%s0 + $0x88] sm:$0xf]
  %v181 = vld [vmem:[%s0 + $0x8c] sm:$0xf]
  %v182 = vld [vmem:[%s0 + $0x90] sm:$0xf]
  %v183 = vld [vmem:[%s0 + $0x94] sm:$0xf]
  %v184 = vld [vmem:[%s0 + $0x98] sm:$0xf]
  %v185 = vld [vmem:[%s0 + $0x9c] sm:$0xf]
  %v186 = vld [vmem:[%s0 + $0xa0] sm:$0xf]
  %v187 = vld [vmem:[%s0 + $0xa4] sm:$0xf]
  %v188 = vld [vmem:[%s0 + $0xa8] sm:$0xf]
  %v189 = vld [vmem:[%s0 + $0xac] sm:$0xf]
  %v190 = vld [vmem:[%s0 + $0xb0] sm:$0xf]
  %v191 = vld [vmem:[%s0 + $0xb4] sm:$0xf]
  %v192 = vld [vmem:[%s0 + $0xb8] sm:$0xf]
  %v193 = vld [vmem:[%s0 + $0xbc] sm:$0xf]
  %v194 = vld [vmem:[%s0 + $0xc0] sm:$0xf]
  %v195 = vld [vmem:[%s0 + $0xc4] sm:$0xf]
  %v196 = vld [vmem:[%s0 + $0xc8] sm:$0xf]
  %v197 = vld [vmem:[%s0 + $0xcc] sm:$0xf]
  %v198 = vld [vmem:[%s0 + $0xd0] sm:$0xf]
  %v199 = vld [vmem:[%s0 + $0xd4] sm:$0xf]
  %v200 = vld [vmem:[%s0 + $0xd8] sm:$0xf]
  %v201 = vld [vmem:[%s0 + $0xdc] sm:$0xf]
  %v202 = vld [vmem:[%s0 + $0xe0] sm:$0xf]
  %v203 = vld [vmem:[%s0 + $0xe4] sm:$0xf]
  %v204 = vld [vmem:[%s0 + $0xe8] sm:$0xf]
  %v205 = vld [vmem:[%s0 + $0xec] sm:$0xf]
  %v206 = vld [vmem:[%s0 + $0xf0] sm:$0xf]
  %v207 = vld [vmem:[%s0 + $0xf4] sm:$0xf]
  %v208 = vld [vmem:[%s0 + $0xf8] sm:$0xf]
  %v209 = vld [vmem:[%s0 + $0xfc] sm:$0xf]
  %v210 = vld [vmem:[%s1] sm:$0xf]
  %v211 = vld [vmem:[%s1 + $0x4] sm:$0xf]
  %v212 = vld [vmem:[%s1 + $0x8] sm:$0xf]
  %v213 = vld [vmem:[%s1 + $0xc] sm:$0xf]
  %v214 = vld [vmem:[%s1 + $0x10] sm:$0x3]
  %v279 = vunpack.c.l.b16 %v146
  %v280 = vunpack.c.l.b16 %v147
  %v281 = vunpack.c.l.b16 %v148
  %v282 = vunpack.c.l.b16 %v149
  %v283 = vunpack.c.l.b16 %v150
  %v284 = vunpack.c.l.b16 %v151
  %v285 = vunpack.c.l.b16 %v152
  %v286 = vunpack.c.l.b16 %v153
  %v287 = vunpack.c.l.b16 %v154
  %v288 = vunpack.c.l.b16 %v155
  %v289 = vunpack.c.l.b16 %v156
  %v290 = vunpack.c.l.b16 %v157
  %v291 = vunpack.c.l.b16 %v158
  %v292 = vunpack.c.l.b16 %v159
  %v293 = vunpack.c.l.b16 %v160
  %v294 = vunpack.c.l.b16 %v161
  %v295 = vunpack.c.l.b16 %v162
  %v296 = vunpack.c.l.b16 %v163
  %v297 = vunpack.c.l.b16 %v164
  %v298 = vunpack.c.l.b16 %v165
  %v299 = vunpack.c.l.b16 %v166
  %v300 = vunpack.c.l.b16 %v167
  %v301 = vunpack.c.l.b16 %v168
  %v302 = vunpack.c.l.b16 %v169
  %v303 = vunpack.c.l.b16 %v170
  %v304 = vunpack.c.l.b16 %v171
  %v305 = vunpack.c.l.b16 %v172
  %v306 = vunpack.c.l.b16 %v173
  %v307 = vunpack.c.l.b16 %v174
  %v308 = vunpack.c.l.b16 %v175
  %v309 = vunpack.c.l.b16 %v176
  %v310 = vunpack.c.l.b16 %v177
  %v311 = vunpack.c.l.b16 %v178
  %v312 = vunpack.c.l.b16 %v179
  %v313 = vunpack.c.l.b16 %v180
  %v314 = vunpack.c.l.b16 %v181
  %v315 = vunpack.c.l.b16 %v182
  %v316 = vunpack.c.l.b16 %v183
  %v317 = vunpack.c.l.b16 %v184
  %v318 = vunpack.c.l.b16 %v185
  %v319 = vunpack.c.l.b16 %v186
  %v320 = vunpack.c.l.b16 %v187
  %v321 = vunpack.c.l.b16 %v188
  %v322 = vunpack.c.l.b16 %v189
  %v323 = vunpack.c.l.b16 %v190
  %v324 = vunpack.c.l.b16 %v191
  %v325 = vunpack.c.l.b16 %v192
  %v326 = vunpack.c.l.b16 %v193
  %v327 = vunpack.c.l.b16 %v194
  %v328 = vunpack.c.l.b16 %v195
  %v329 = vunpack.c.l.b16 %v196
  %v330 = vunpack.c.l.b16 %v197
  %v331 = vunpack.c.l.b16 %v198
  %v332 = vunpack.c.l.b16 %v199
  %v333 = vunpack.c.l.b16 %v200
  %v334 = vunpack.c.l.b16 %v201
  %v335 = vunpack.c.l.b16 %v202
  %v336 = vunpack.c.l.b16 %v203
  %v337 = vunpack.c.l.b16 %v204
  %v338 = vunpack.c.l.b16 %v205
  %v339 = vunpack.c.l.b16 %v206
  %v340 = vunpack.c.l.b16 %v207
  %v341 = vunpack.c.l.b16 %v208
  %v342 = vunpack.c.l.b16 %v209
  %v343 = vpack.c.b16 %v280, %v279
  %v344 = vpack.c.b16 %v282, %v281
  %v345 = vpack.c.b16 %v284, %v283
  %v346 = vpack.c.b16 %v286, %v285
  %v347 = vpack.c.b16 %v288, %v287
  %v348 = vpack.c.b16 %v290, %v289
  %v349 = vpack.c.b16 %v292, %v291
  %v350 = vpack.c.b16 %v294, %v293
  %v351 = vpack.c.b16 %v296, %v295
  %v352 = vpack.c.b16 %v298, %v297
  %v353 = vpack.c.b16 %v300, %v299
  %v354 = vpack.c.b16 %v302, %v301
  %v355 = vpack.c.b16 %v304, %v303
  %v356 = vpack.c.b16 %v306, %v305
  %v357 = vpack.c.b16 %v308, %v307
  %v358 = vpack.c.b16 %v310, %v309
  %v359 = vpack.c.b16 %v312, %v311
  %v360 = vpack.c.b16 %v314, %v313
  %v361 = vpack.c.b16 %v316, %v315
  %v362 = vpack.c.b16 %v318, %v317
  %v363 = vpack.c.b16 %v320, %v319
  %v364 = vpack.c.b16 %v322, %v321
  %v365 = vpack.c.b16 %v324, %v323
  %v366 = vpack.c.b16 %v326, %v325
  %v367 = vpack.c.b16 %v328, %v327
  %v368 = vpack.c.b16 %v330, %v329
  %v369 = vpack.c.b16 %v332, %v331
  %v370 = vpack.c.b16 %v334, %v333
  %v371 = vpack.c.b16 %v336, %v335
  %v372 = vpack.c.b16 %v338, %v337
  %v373 = vpack.c.b16 %v340, %v339
  %v374 = vpack.c.b16 %v342, %v341
  %v380 = vunpack.c.l.b16 %v210
  %v381 = vunpack.c.l.b16 %v211
  %v382 = vunpack.c.l.b16 %v212
  %v383 = vunpack.c.l.b16 %v213
  %v384 = vunpack.c.l.b16 %v214
  %v385 = vpack.c.b16 %v381, %v380
  %v386 = vpack.c.b16 %v383, %v382
  %v387 = vpack.c.b16 %v384, %v384
  %vm390 = vcmask 293888
  %v392 = vsel %vm390, %v343, 0
  %v395 = vsel %vm390, %v344, 0
  %v398 = vsel %vm390, %v345, 0
  %v401 = vsel %vm390, %v346, 0
  %v404 = vsel %vm390, %v347, 0
  %v407 = vsel %vm390, %v348, 0
  %v410 = vsel %vm390, %v349, 0
  %v413 = vsel %vm390, %v350, 0
  %v416 = vsel %vm390, %v351, 0
  %v419 = vsel %vm390, %v352, 0
  %v422 = vsel %vm390, %v353, 0
  %v425 = vsel %vm390, %v354, 0
  %v428 = vsel %vm390, %v355, 0
  %v431 = vsel %vm390, %v356, 0
  %v434 = vsel %vm390, %v357, 0
  %v437 = vsel %vm390, %v358, 0
  %v440 = vsel %vm390, %v359, 0
  %v443 = vsel %vm390, %v360, 0
  %v446 = vsel %vm390, %v361, 0
  %v449 = vsel %vm390, %v362, 0
  %v452 = vsel %vm390, %v363, 0
  %v455 = vsel %vm390, %v364, 0
  %v458 = vsel %vm390, %v365, 0
  %v461 = vsel %vm390, %v366, 0
  %v464 = vsel %vm390, %v367, 0
  %v467 = vsel %vm390, %v368, 0
  %v470 = vsel %vm390, %v369, 0
  %v473 = vsel %vm390, %v370, 0
  %v476 = vsel %vm390, %v371, 0
  %v479 = vsel %vm390, %v372, 0
  %v482 = vsel %vm390, %v373, 0
  %v485 = vsel %vm390, %v374, 0
  %vm487 = vcmask 1041408
  %v489 = vsel %vm487, %v387, 0
  %491 = vmatprep.subr.bf16.mxu0 0
  %492 = vmatpush1.bf16.msra.mxu0 %v385
  %493 = vmatprep.subr.bf16.mxu0 0
  %494 = vmatpush1.bf16.msra.mxu0 %v386
  %495 = vmatprep.subr.bf16.mxu0 0
  %496 = vmatpush1.bf16.msra.mxu0 %v489
  %497 = vmatprep.subr.bf16.mxu0 0
  %498 = vmatpush1.bf16.msra.mxu0 0
  %499 = vmatprep.subr.bf16.mxu0 0
  %500 = vmatpush1.bf16.msra.mxu0 0
  %501 = vmatprep.subr.bf16.mxu0 0
  %502 = vmatpush1.bf16.msra.mxu0 0
  %503 = vmatprep.subr.bf16.mxu0 0
  %504 = vmatpush1.bf16.msra.mxu0 0
  %505 = vmatprep.subr.bf16.mxu0 0
  %506 = vmatpush1.bf16.msra.mxu0 0
  %507 = vmatprep.subr.bf16.mxu0 0
  %508 = vmatpush1.bf16.msra.mxu0 0
  %509 = vmatprep.subr.bf16.mxu0 0
  %510 = vmatpush1.bf16.msra.mxu0 0
  %511 = vmatprep.subr.bf16.mxu0 0
  %512 = vmatpush1.bf16.msra.mxu0 0
  %513 = vmatprep.subr.bf16.mxu0 0
  %514 = vmatpush1.bf16.msra.mxu0 0
  %515 = vmatprep.subr.bf16.mxu0 0
  %516 = vmatpush1.bf16.msra.mxu0 0
  %517 = vmatprep.subr.bf16.mxu0 0
  %518 = vmatpush1.bf16.msra.mxu0 0
  %519 = vmatprep.subr.bf16.mxu0 0
  %520 = vmatpush1.bf16.msra.mxu0 0
  %521 = vmatprep.subr.bf16.mxu0 0
  %522 = vmatpush1.bf16.msra.mxu0 0
  %523 = vmatprep.mubr.bf16.mxu0 0
  %524 = vmatmul.mubr.bf16.gmra.mrb[0].mxu0 %v392
  %v525 = vpop.f32.mrb[0].mxu0
  %v526 = vadd.f32 0.0, %v525
  %v527 = vpop.f32.mrb[0].mxu0
  %v528 = vpop.f32.mrb[0].mxu0
  %v529 = vadd.f32 0.0, %v528
  %v530 = vpop.f32.mrb[0].mxu0
  %531 = vmatprep.mubr.bf16.mxu0 0
  %532 = vmatmul.mubr.bf16.gmra.mrb[0].mxu0 %v395
  %v533 = vpop.f32.mrb[0].mxu0
  %v534 = vadd.f32 0.0, %v533
  %v535 = vpop.f32.mrb[0].mxu0
  %v536 = vpop.f32.mrb[0].mxu0
  %v537 = vadd.f32 0.0, %v536
  %v538 = vpop.f32.mrb[0].mxu0
  %539 = vmatprep.mubr.bf16.mxu0 0
  %540 = vmatmul.mubr.bf16.gmra.mrb[0].mxu0 %v398
  %v541 = vpop.f32.mrb[0].mxu0
  %v542 = vadd.f32 0.0, %v541
  %v543 = vpop.f32.mrb[0].mxu0
  %v544 = vpop.f32.mrb[0].mxu0
  %v545 = vadd.f32 0.0, %v544
  %v546 = vpop.f32.mrb[0].mxu0
  %547 = vmatprep.mubr.bf16.mxu0 0
  %548 = vmatmul.mubr.bf16.gmra.mrb[0].mxu0 %v401
  %v549 = vpop.f32.mrb[0].mxu0
  %v550 = vadd.f32 0.0, %v549
  %v551 = vpop.f32.mrb[0].mxu0
  %v552 = vpop.f32.mrb[0].mxu0
  %v553 = vadd.f32 0.0, %v552
  %v554 = vpop.f32.mrb[0].mxu0
  %555 = vmatprep.mubr.bf16.mxu0 0
  %556 = vmatmul.mubr.bf16.gmra.mrb[0].mxu0 %v404
  %v557 = vpop.f32.mrb[0].mxu0
  %v558 = vadd.f32 0.0, %v557
  %v559 = vpop.f32.mrb[0].mxu0
  %v560 = vpop.f32.mrb[0].mxu0
  %v561 = vadd.f32 0.0, %v560
  %v562 = vpop.f32.mrb[0].mxu0
  %563 = vmatprep.mubr.bf16.mxu0 0
  %564 = vmatmul.mubr.bf16.gmra.mrb[0].mxu0 %v407
  %v565 = vpop.f32.mrb[0].mxu0
  %v566 = vadd.f32 0.0, %v565
  %v567 = vpop.f32.mrb[0].mxu0
  %v568 = vpop.f32.mrb[0].mxu0
  %v569 = vadd.f32 0.0, %v568
  %v570 = vpop.f32.mrb[0].mxu0
  %571 = vmatprep.mubr.bf16.mxu0 0
  %572 = vmatmul.mubr.bf16.gmra.mrb[0].mxu0 %v410
  %v573 = vpop.f32.mrb[0].mxu0
  %v574 = vadd.f32 0.0, %v573
  %v575 = vpop.f32.mrb[0].mxu0
  %v576 = vpop.f32.mrb[0].mxu0
  %v577 = vadd.f32 0.0, %v576
  %v578 = vpop.f32.mrb[0].mxu0
  %579 = vmatprep.mubr.bf16.mxu0 0
  %580 = vmatmul.mubr.bf16.gmra.mrb[0].mxu0 %v413
  %v581 = vpop.f32.mrb[0].mxu0
  %v582 = vadd.f32 0.0, %v581
  %v583 = vpop.f32.mrb[0].mxu0
  %v584 = vpop.f32.mrb[0].mxu0
  %v585 = vadd.f32 0.0, %v584
  %v586 = vpop.f32.mrb[0].mxu0
  %587 = vmatprep.mubr.bf16.mxu0 0
  %588 = vmatmul.mubr.bf16.gmra.mrb[0].mxu0 %v416
  %v589 = vpop.f32.mrb[0].mxu0
  %v590 = vadd.f32 0.0, %v589
  %v591 = vpop.f32.mrb[0].mxu0
  %v592 = vpop.f32.mrb[0].mxu0
  %v593 = vadd.f32 0.0, %v592
  %v594 = vpop.f32.mrb[0].mxu0
  %595 = vmatprep.mubr.bf16.mxu0 0
  %596 = vmatmul.mubr.bf16.gmra.mrb[0].mxu0 %v419
  %v597 = vpop.f32.mrb[0].mxu0
  %v598 = vadd.f32 0.0, %v597
  %v599 = vpop.f32.mrb[0].mxu0
  %v600 = vpop.f32.mrb[0].mxu0
  %v601 = vadd.f32 0.0, %v600
  %v602 = vpop.f32.mrb[0].mxu0
  %603 = vmatprep.mubr.bf16.mxu0 0
  %604 = vmatmul.mubr.bf16.gmra.mrb[0].mxu0 %v422
  %v605 = vpop.f32.mrb[0].mxu0
  %v606 = vadd.f32 0.0, %v605
  %v607 = vpop.f32.mrb[0].mxu0
  %v608 = vpop.f32.mrb[0].mxu0
  %v609 = vadd.f32 0.0, %v608
  %v610 = vpop.f32.mrb[0].mxu0
  %611 = vmatprep.mubr.bf16.mxu0 0
  %612 = vmatmul.mubr.bf16.gmra.mrb[0].mxu0 %v425
  %v613 = vpop.f32.mrb[0].mxu0
  %v614 = vadd.f32 0.0, %v613
  %v615 = vpop.f32.mrb[0].mxu0
  %v616 = vpop.f32.mrb[0].mxu0
  %v617 = vadd.f32 0.0, %v616
  %v618 = vpop.f32.mrb[0].mxu0
  %619 = vmatprep.mubr.bf16.mxu0 0
  %620 = vmatmul.mubr.bf16.gmra.mrb[0].mxu0 %v428
  %v621 = vpop.f32.mrb[0].mxu0
  %v622 = vadd.f32 0.0, %v621
  %v623 = vpop.f32.mrb[0].mxu0
  %v624 = vpop.f32.mrb[0].mxu0
  %v625 = vadd.f32 0.0, %v624
  %v626 = vpop.f32.mrb[0].mxu0
  %627 = vmatprep.mubr.bf16.mxu0 0
  %628 = vmatmul.mubr.bf16.gmra.mrb[0].mxu0 %v431
  %v629 = vpop.f32.mrb[0].mxu0
  %v630 = vadd.f32 0.0, %v629
  %v631 = vpop.f32.mrb[0].mxu0
  %v632 = vpop.f32.mrb[0].mxu0
  %v633 = vadd.f32 0.0, %v632
  %v634 = vpop.f32.mrb[0].mxu0
  %635 = vmatprep.mubr.bf16.mxu0 0
  %636 = vmatmul.mubr.bf16.gmra.mrb[0].mxu0 %v434
  %v637 = vpop.f32.mrb[0].mxu0
  %v638 = vadd.f32 0.0, %v637
  %v639 = vpop.f32.mrb[0].mxu0
  %v640 = vpop.f32.mrb[0].mxu0
  %v641 = vadd.f32 0.0, %v640
  %v642 = vpop.f32.mrb[0].mxu0
  %643 = vmatprep.mubr.bf16.mxu0 0
  %644 = vmatmul.mubr.bf16.gmra.mrb[0].mxu0 %v437
  %v645 = vpop.f32.mrb[0].mxu0
  %v646 = vadd.f32 0.0, %v645
  %v647 = vpop.f32.mrb[0].mxu0
  %v648 = vpop.f32.mrb[0].mxu0
  %v649 = vadd.f32 0.0, %v648
  %v650 = vpop.f32.mrb[0].mxu0
  %651 = vmatprep.mubr.bf16.mxu0 0
  %652 = vmatmul.mubr.bf16.gmra.mrb[0].mxu0 %v440
  %v653 = vpop.f32.mrb[0].mxu0
  %v654 = vadd.f32 0.0, %v653
  %v655 = vpop.f32.mrb[0].mxu0
  %v656 = vpop.f32.mrb[0].mxu0
  %v657 = vadd.f32 0.0, %v656
  %v658 = vpop.f32.mrb[0].mxu0
  %659 = vmatprep.mubr.bf16.mxu0 0
  %660 = vmatmul.mubr.bf16.gmra.mrb[0].mxu0 %v443
  %v661 = vpop.f32.mrb[0].mxu0
  %v662 = vadd.f32 0.0, %v661
  %v663 = vpop.f32.mrb[0].mxu0
  %v664 = vpop.f32.mrb[0].mxu0
  %v665 = vadd.f32 0.0, %v664
  %v666 = vpop.f32.mrb[0].mxu0
  %667 = vmatprep.mubr.bf16.mxu0 0
  %668 = vmatmul.mubr.bf16.gmra.mrb[0].mxu0 %v446
  %v669 = vpop.f32.mrb[0].mxu0
  %v670 = vadd.f32 0.0, %v669
  %v671 = vpop.f32.mrb[0].mxu0
  %v672 = vpop.f32.mrb[0].mxu0
  %v673 = vadd.f32 0.0, %v672
  %v674 = vpop.f32.mrb[0].mxu0
  %675 = vmatprep.mubr.bf16.mxu0 0
  %676 = vmatmul.mubr.bf16.gmra.mrb[0].mxu0 %v449
  %v677 = vpop.f32.mrb[0].mxu0
  %v678 = vadd.f32 0.0, %v677
  %v679 = vpop.f32.mrb[0].mxu0
  %v680 = vpop.f32.mrb[0].mxu0
  %v681 = vadd.f32 0.0, %v680
  %v682 = vpop.f32.mrb[0].mxu0
  %683 = vmatprep.mubr.bf16.mxu0 0
  %684 = vmatmul.mubr.bf16.gmra.mrb[0].mxu0 %v452
  %v685 = vpop.f32.mrb[0].mxu0
  %v686 = vadd.f32 0.0, %v685
  %v687 = vpop.f32.mrb[0].mxu0
  %v688 = vpop.f32.mrb[0].mxu0
  %v689 = vadd.f32 0.0, %v688
  %v690 = vpop.f32.mrb[0].mxu0
  %691 = vmatprep.mubr.bf16.mxu0 0
  %692 = vmatmul.mubr.bf16.gmra.mrb[0].mxu0 %v455
  %v693 = vpop.f32.mrb[0].mxu0
  %v694 = vadd.f32 0.0, %v693
  %v695 = vpop.f32.mrb[0].mxu0
  %v696 = vpop.f32.mrb[0].mxu0
  %v697 = vadd.f32 0.0, %v696
  %v698 = vpop.f32.mrb[0].mxu0
  %699 = vmatprep.mubr.bf16.mxu0 0
  %700 = vmatmul.mubr.bf16.gmra.mrb[0].mxu0 %v458
  %v701 = vpop.f32.mrb[0].mxu0
  %v702 = vadd.f32 0.0, %v701
  %v703 = vpop.f32.mrb[0].mxu0
  %v704 = vpop.f32.mrb[0].mxu0
  %v705 = vadd.f32 0.0, %v704
  %v706 = vpop.f32.mrb[0].mxu0
  %707 = vmatprep.mubr.bf16.mxu0 0
  %708 = vmatmul.mubr.bf16.gmra.mrb[0].mxu0 %v461
  %v709 = vpop.f32.mrb[0].mxu0
  %v710 = vadd.f32 0.0, %v709
  %v711 = vpop.f32.mrb[0].mxu0
  %v712 = vpop.f32.mrb[0].mxu0
  %v713 = vadd.f32 0.0, %v712
  %v714 = vpop.f32.mrb[0].mxu0
  %715 = vmatprep.mubr.bf16.mxu0 0
  %716 = vmatmul.mubr.bf16.gmra.mrb[0].mxu0 %v464
  %v717 = vpop.f32.mrb[0].mxu0
  %v718 = vadd.f32 0.0, %v717
  %v719 = vpop.f32.mrb[0].mxu0
  %v720 = vpop.f32.mrb[0].mxu0
  %v721 = vadd.f32 0.0, %v720
  %v722 = vpop.f32.mrb[0].mxu0
  %723 = vmatprep.mubr.bf16.mxu0 0
  %724 = vmatmul.mubr.bf16.gmra.mrb[0].mxu0 %v467
  %v725 = vpop.f32.mrb[0].mxu0
  %v726 = vadd.f32 0.0, %v725
  %v727 = vpop.f32.mrb[0].mxu0
  %v728 = vpop.f32.mrb[0].mxu0
  %v729 = vadd.f32 0.0, %v728
  %v730 = vpop.f32.mrb[0].mxu0
  %731 = vmatprep.mubr.bf16.mxu0 0
  %732 = vmatmul.mubr.bf16.gmra.mrb[0].mxu0 %v470
  %v733 = vpop.f32.mrb[0].mxu0
  %v734 = vadd.f32 0.0, %v733
  %v735 = vpop.f32.mrb[0].mxu0
  %v736 = vpop.f32.mrb[0].mxu0
  %v737 = vadd.f32 0.0, %v736
  %v738 = vpop.f32.mrb[0].mxu0
  %739 = vmatprep.mubr.bf16.mxu0 0
  %740 = vmatmul.mubr.bf16.gmra.mrb[0].mxu0 %v473
  %v741 = vpop.f32.mrb[0].mxu0
  %v742 = vadd.f32 0.0, %v741
  %v743 = vpop.f32.mrb[0].mxu0
  %v744 = vpop.f32.mrb[0].mxu0
  %v745 = vadd.f32 0.0, %v744
  %v746 = vpop.f32.mrb[0].mxu0
  %747 = vmatprep.mubr.bf16.mxu0 0
  %748 = vmatmul.mubr.bf16.gmra.mrb[0].mxu0 %v476
  %v749 = vpop.f32.mrb[0].mxu0
  %v750 = vadd.f32 0.0, %v749
  %v751 = vpop.f32.mrb[0].mxu0
  %v752 = vpop.f32.mrb[0].mxu0
  %v753 = vadd.f32 0.0, %v752
  %v754 = vpop.f32.mrb[0].mxu0
  %755 = vmatprep.mubr.bf16.mxu0 0
  %756 = vmatmul.mubr.bf16.gmra.mrb[0].mxu0 %v479
  %v757 = vpop.f32.mrb[0].mxu0
  %v758 = vadd.f32 0.0, %v757
  %v759 = vpop.f32.mrb[0].mxu0
  %v760 = vpop.f32.mrb[0].mxu0
  %v761 = vadd.f32 0.0, %v760
  %v762 = vpop.f32.mrb[0].mxu0
  %763 = vmatprep.mubr.bf16.mxu0 0
  %764 = vmatmul.mubr.bf16.gmra.mrb[0].mxu0 %v482
  %v765 = vpop.f32.mrb[0].mxu0
  %v766 = vadd.f32 0.0, %v765
  %v767 = vpop.f32.mrb[0].mxu0
  %v768 = vpop.f32.mrb[0].mxu0
  %v769 = vadd.f32 0.0, %v768
  %v770 = vpop.f32.mrb[0].mxu0
  %771 = vmatprep.mubr.bf16.mxu0 0
  %772 = vmatmul.mubr.bf16.gmra.mrb[0].mxu0 %v485
  %v773 = vpop.f32.mrb[0].mxu0
  %v774 = vadd.f32 0.0, %v773
  %v775 = vpop.f32.mrb[0].mxu0
  %v776 = vpop.f32.mrb[0].mxu0
  %v777 = vadd.f32 0.0, %v776
  %v778 = vpop.f32.mrb[0].mxu0
  %779 = vdwg.mxu0
  %v780 = vadd.f32 %v82, %v526
  %v781 = vadd.f32 %v83, %v529
  %v782 = vadd.f32 %v84, %v534
  %v783 = vadd.f32 %v85, %v537
  %v784 = vadd.f32 %v86, %v542
  %v785 = vadd.f32 %v87, %v545
  %v786 = vadd.f32 %v88, %v550
  %v787 = vadd.f32 %v89, %v553
  %v788 = vadd.f32 %v90, %v558
  %v789 = vadd.f32 %v91, %v561
  %v790 = vadd.f32 %v92, %v566
  %v791 = vadd.f32 %v93, %v569
  %v792 = vadd.f32 %v94, %v574
  %v793 = vadd.f32 %v95, %v577
  %v794 = vadd.f32 %v96, %v582
  %v795 = vadd.f32 %v97, %v585
  %v796 = vadd.f32 %v98, %v590
  %v797 = vadd.f32 %v99, %v593
  %v798 = vadd.f32 %v100, %v598
  %v799 = vadd.f32 %v101, %v601
  %v800 = vadd.f32 %v102, %v606
  %v801 = vadd.f32 %v103, %v609
  %v802 = vadd.f32 %v104, %v614
  %v803 = vadd.f32 %v105, %v617
  %v804 = vadd.f32 %v106, %v622
  %v805 = vadd.f32 %v107, %v625
  %v806 = vadd.f32 %v108, %v630
  %v807 = vadd.f32 %v109, %v633
  %v808 = vadd.f32 %v110, %v638
  %v809 = vadd.f32 %v111, %v641
  %v810 = vadd.f32 %v112, %v646
  %v811 = vadd.f32 %v113, %v649
  %v812 = vadd.f32 %v114, %v654
  %v813 = vadd.f32 %v115, %v657
  %v814 = vadd.f32 %v116, %v662
  %v815 = vadd.f32 %v117, %v665
  %v816 = vadd.f32 %v118, %v670
  %v817 = vadd.f32 %v119, %v673
  %v818 = vadd.f32 %v120, %v678
  %v819 = vadd.f32 %v121, %v681
  %v820 = vadd.f32 %v122, %v686
  %v821 = vadd.f32 %v123, %v689
  %v822 = vadd.f32 %v124, %v694
  %v823 = vadd.f32 %v125, %v697
  %v824 = vadd.f32 %v126, %v702
  %v825 = vadd.f32 %v127, %v705
  %v826 = vadd.f32 %v128, %v710
  %v827 = vadd.f32 %v129, %v713
  %v828 = vadd.f32 %v130, %v718
  %v829 = vadd.f32 %v131, %v721
  %v830 = vadd.f32 %v132, %v726
  %v831 = vadd.f32 %v133, %v729
  %v832 = vadd.f32 %v134, %v734
  %v833 = vadd.f32 %v135, %v737
  %v834 = vadd.f32 %v136, %v742
  %v835 = vadd.f32 %v137, %v745
  %v836 = vadd.f32 %v138, %v750
  %v837 = vadd.f32 %v139, %v753
  %v838 = vadd.f32 %v140, %v758
  %v839 = vadd.f32 %v141, %v761
  %v840 = vadd.f32 %v142, %v766
  %v841 = vadd.f32 %v143, %v769
  %v842 = vadd.f32 %v144, %v774
  %v843 = vadd.f32 %v145, %v777
  %844 = vst [vmem:[#allocation2] sm:$0xff] %v780
  %845 = vst [vmem:[#allocation2 + $0x8] sm:$0xff] %v781
  %846 = vst [vmem:[#allocation2 + $0x10] sm:$0xff] %v782
  %847 = vst [vmem:[#allocation2 + $0x18] sm:$0xff] %v783
  %848 = vst [vmem:[#allocation2 + $0x20] sm:$0xff] %v784
  %849 = vst [vmem:[#allocation2 + $0x28] sm:$0xff] %v785
  %850 = vst [vmem:[#allocation2 + $0x30] sm:$0xff] %v786
  %851 = vst [vmem:[#allocation2 + $0x38] sm:$0xff] %v787
  %852 = vst [vmem:[#allocation2 + $0x40] sm:$0xff] %v788
  %853 = vst [vmem:[#allocation2 + $0x48] sm:$0xff] %v789
  %854 = vst [vmem:[#allocation2 + $0x50] sm:$0xff] %v790
  %855 = vst [vmem:[#allocation2 + $0x58] sm:$0xff] %v791
  %856 = vst [vmem:[#allocation2 + $0x60] sm:$0xff] %v792
  %857 = vst [vmem:[#allocation2 + $0x68] sm:$0xff] %v793
  %858 = vst [vmem:[#allocation2 + $0x70] sm:$0xff] %v794
  %859 = vst [vmem:[#allocation2 + $0x78] sm:$0xff] %v795
  %860 = vst [vmem:[#allocation2 + $0x80] sm:$0xff] %v796
  %861 = vst [vmem:[#allocation2 + $0x88] sm:$0xff] %v797
  %862 = vst [vmem:[#allocation2 + $0x90] sm:$0xff] %v798
  %863 = vst [vmem:[#allocation2 + $0x98] sm:$0xff] %v799
  %864 = vst [vmem:[#allocation2 + $0xa0] sm:$0xff] %v800
  %865 = vst [vmem:[#allocation2 + $0xa8] sm:$0xff] %v801
  %866 = vst [vmem:[#allocation2 + $0xb0] sm:$0xff] %v802
  %867 = vst [vmem:[#allocation2 + $0xb8] sm:$0xff] %v803
  %868 = vst [vmem:[#allocation2 + $0xc0] sm:$0xff] %v804
  %869 = vst [vmem:[#allocation2 + $0xc8] sm:$0xff] %v805
  %870 = vst [vmem:[#allocation2 + $0xd0] sm:$0xff] %v806
  %871 = vst [vmem:[#allocation2 + $0xd8] sm:$0xff] %v807
  %872 = vst [vmem:[#allocation2 + $0xe0] sm:$0xff] %v808
  %873 = vst [vmem:[#allocation2 + $0xe8] sm:$0xff] %v809
  %874 = vst [vmem:[#allocation2 + $0xf0] sm:$0xff] %v810
  %875 = vst [vmem:[#allocation2 + $0xf8] sm:$0xff] %v811
  %876 = vst [vmem:[#allocation2 + $0x100] sm:$0xff] %v812
  %877 = vst [vmem:[#allocation2 + $0x108] sm:$0xff] %v813
  %878 = vst [vmem:[#allocation2 + $0x110] sm:$0xff] %v814
  %879 = vst [vmem:[#allocation2 + $0x118] sm:$0xff] %v815
  %880 = vst [vmem:[#allocation2 + $0x120] sm:$0xff] %v816
  %881 = vst [vmem:[#allocation2 + $0x128] sm:$0xff] %v817
  %882 = vst [vmem:[#allocation2 + $0x130] sm:$0xff] %v818
  %883 = vst [vmem:[#allocation2 + $0x138] sm:$0xff] %v819
  %884 = vst [vmem:[#allocation2 + $0x140] sm:$0xff] %v820
  %885 = vst [vmem:[#allocation2 + $0x148] sm:$0xff] %v821
  %886 = vst [vmem:[#allocation2 + $0x150] sm:$0xff] %v822
  %887 = vst [vmem:[#allocation2 + $0x158] sm:$0xff] %v823
  %888 = vst [vmem:[#allocation2 + $0x160] sm:$0xff] %v824
  %889 = vst [vmem:[#allocation2 + $0x168] sm:$0xff] %v825
  %890 = vst [vmem:[#allocation2 + $0x170] sm:$0xff] %v826
  %891 = vst [vmem:[#allocation2 + $0x178] sm:$0xff] %v827
  %892 = vst [vmem:[#allocation2 + $0x180] sm:$0xff] %v828
  %893 = vst [vmem:[#allocation2 + $0x188] sm:$0xff] %v829
  %894 = vst [vmem:[#allocation2 + $0x190] sm:$0xff] %v830
  %895 = vst [vmem:[#allocation2 + $0x198] sm:$0xff] %v831
  %896 = vst [vmem:[#allocation2 + $0x1a0] sm:$0xff] %v832
  %897 = vst [vmem:[#allocation2 + $0x1a8] sm:$0xff] %v833
  %898 = vst [vmem:[#allocation2 + $0x1b0] sm:$0xff] %v834
  %899 = vst [vmem:[#allocation2 + $0x1b8] sm:$0xff] %v835
  %900 = vst [vmem:[#allocation2 + $0x1c0] sm:$0xff] %v836
  %901 = vst [vmem:[#allocation2 + $0x1c8] sm:$0xff] %v837
  %902 = vst [vmem:[#allocation2 + $0x1d0] sm:$0xff] %v838
  %903 = vst [vmem:[#allocation2 + $0x1d8] sm:$0xff] %v839
  %904 = vst [vmem:[#allocation2 + $0x1e0] sm:$0xff] %v840
  %905 = vst [vmem:[#allocation2 + $0x1e8] sm:$0xff] %v841
  %906 = vst [vmem:[#allocation2 + $0x1f0] sm:$0xff] %v842
  %907 = vst [vmem:[#allocation2 + $0x1f8] sm:$0xff] %v843
  // Predicated region
  $region14: #{cnn_block_forward.2} parent=0 // pred_check
    %p908 = pneg %p14
  $region15: #{cnn_block_forward.2} parent=0 // pred_check_branch
    %910 = sbr.rel (%p908) target = $region17
  $region16: #{cnn_block_forward.2} parent=0 // pred_region
    %v911 = vld [vmem:[#allocation2] sm:$0xff]
    %v912 = vld [vmem:[#allocation2 + $0x8] sm:$0xff]
    %v913 = vld [vmem:[#allocation2 + $0x10] sm:$0xff]
    %v914 = vld [vmem:[#allocation2 + $0x18] sm:$0xff]
    %v915 = vld [vmem:[#allocation2 + $0x20] sm:$0xff]
    %v916 = vld [vmem:[#allocation2 + $0x28] sm:$0xff]
    %v917 = vld [vmem:[#allocation2 + $0x30] sm:$0xff]
    %v918 = vld [vmem:[#allocation2 + $0x38] sm:$0xff]
    %v919 = vld [vmem:[#allocation2 + $0x40] sm:$0xff]
    %v920 = vld [vmem:[#allocation2 + $0x48] sm:$0xff]
    %v921 = vld [vmem:[#allocation2 + $0x50] sm:$0xff]
    %v922 = vld [vmem:[#allocation2 + $0x58] sm:$0xff]
    %v923 = vld [vmem:[#allocation2 + $0x60] sm:$0xff]
    %v924 = vld [vmem:[#allocation2 + $0x68] sm:$0xff]
    %v925 = vld [vmem:[#allocation2 + $0x70] sm:$0xff]
    %v926 = vld [vmem:[#allocation2 + $0x78] sm:$0xff]
    %v927 = vld [vmem:[#allocation2 + $0x80] sm:$0xff]
    %v928 = vld [vmem:[#allocation2 + $0x88] sm:$0xff]
    %v929 = vld [vmem:[#allocation2 + $0x90] sm:$0xff]
    %v930 = vld [vmem:[#allocation2 + $0x98] sm:$0xff]
    %v931 = vld [vmem:[#allocation2 + $0xa0] sm:$0xff]
    %v932 = vld [vmem:[#allocation2 + $0xa8] sm:$0xff]
    %v933 = vld [vmem:[#allocation2 + $0xb0] sm:$0xff]
    %v934 = vld [vmem:[#allocation2 + $0xb8] sm:$0xff]
    %v935 = vld [vmem:[#allocation2 + $0xc0] sm:$0xff]
    %v936 = vld [vmem:[#allocation2 + $0xc8] sm:$0xff]
    %v937 = vld [vmem:[#allocation2 + $0xd0] sm:$0xff]
    %v938 = vld [vmem:[#allocation2 + $0xd8] sm:$0xff]
    %v939 = vld [vmem:[#allocation2 + $0xe0] sm:$0xff]
    %v940 = vld [vmem:[#allocation2 + $0xe8] sm:$0xff]
    %v941 = vld [vmem:[#allocation2 + $0xf0] sm:$0xff]
    %v942 = vld [vmem:[#allocation2 + $0xf8] sm:$0xff]
    %v943 = vld [vmem:[#allocation2 + $0x100] sm:$0xff]
    %v944 = vld [vmem:[#allocation2 + $0x108] sm:$0xff]
    %v945 = vld [vmem:[#allocation2 + $0x110] sm:$0xff]
    %v946 = vld [vmem:[#allocation2 + $0x118] sm:$0xff]
    %v947 = vld [vmem:[#allocation2 + $0x120] sm:$0xff]
    %v948 = vld [vmem:[#allocation2 + $0x128] sm:$0xff]
    %v949 = vld [vmem:[#allocation2 + $0x130] sm:$0xff]
    %v950 = vld [vmem:[#allocation2 + $0x138] sm:$0xff]
    %v951 = vld [vmem:[#allocation2 + $0x140] sm:$0xff]
    %v952 = vld [vmem:[#allocation2 + $0x148] sm:$0xff]
    %v953 = vld [vmem:[#allocation2 + $0x150] sm:$0xff]
    %v954 = vld [vmem:[#allocation2 + $0x158] sm:$0xff]
    %v955 = vld [vmem:[#allocation2 + $0x160] sm:$0xff]
    %v956 = vld [vmem:[#allocation2 + $0x168] sm:$0xff]
    %v957 = vld [vmem:[#allocation2 + $0x170] sm:$0xff]
    %v958 = vld [vmem:[#allocation2 + $0x178] sm:$0xff]
    %v959 = vld [vmem:[#allocation2 + $0x180] sm:$0xff]
    %v960 = vld [vmem:[#allocation2 + $0x188] sm:$0xff]
    %v961 = vld [vmem:[#allocation2 + $0x190] sm:$0xff]
    %v962 = vld [vmem:[#allocation2 + $0x198] sm:$0xff]
    %v963 = vld [vmem:[#allocation2 + $0x1a0] sm:$0xff]
    %v964 = vld [vmem:[#allocation2 + $0x1a8] sm:$0xff]
    %v965 = vld [vmem:[#allocation2 + $0x1b0] sm:$0xff]
    %v966 = vld [vmem:[#allocation2 + $0x1b8] sm:$0xff]
    %v967 = vld [vmem:[#allocation2 + $0x1c0] sm:$0xff]
    %v968 = vld [vmem:[#allocation2 + $0x1c8] sm:$0xff]
    %v969 = vld [vmem:[#allocation2 + $0x1d0] sm:$0xff]
    %v970 = vld [vmem:[#allocation2 + $0x1d8] sm:$0xff]
    %v971 = vld [vmem:[#allocation2 + $0x1e0] sm:$0xff]
    %v972 = vld [vmem:[#allocation2 + $0x1e8] sm:$0xff]
    %v973 = vld [vmem:[#allocation2 + $0x1f0] sm:$0xff]
    %v974 = vld [vmem:[#allocation2 + $0x1f8] sm:$0xff]
    %v975 = vpack.c.bf16 %v912, %v911
    %v976 = vpack.c.bf16 %v914, %v913
    %v977 = vpack.c.bf16 %v916, %v915
    %v978 = vpack.c.bf16 %v918, %v917
    %v979 = vpack.c.bf16 %v920, %v919
    %v980 = vpack.c.bf16 %v922, %v921
    %v981 = vpack.c.bf16 %v924, %v923
    %v982 = vpack.c.bf16 %v926, %v925
    %v983 = vpack.c.bf16 %v928, %v927
    %v984 = vpack.c.bf16 %v930, %v929
    %v985 = vpack.c.bf16 %v932, %v931
    %v986 = vpack.c.bf16 %v934, %v933
    %v987 = vpack.c.bf16 %v936, %v935
    %v988 = vpack.c.bf16 %v938, %v937
    %v989 = vpack.c.bf16 %v940, %v939
    %v990 = vpack.c.bf16 %v942, %v941
    %v991 = vpack.c.bf16 %v944, %v943
    %v992 = vpack.c.bf16 %v946, %v945
    %v993 = vpack.c.bf16 %v948, %v947
    %v994 = vpack.c.bf16 %v950, %v949
    %v995 = vpack.c.bf16 %v952, %v951
    %v996 = vpack.c.bf16 %v954, %v953
    %v997 = vpack.c.bf16 %v956, %v955
    %v998 = vpack.c.bf16 %v958, %v957
    %v999 = vpack.c.bf16 %v960, %v959
    %v1000 = vpack.c.bf16 %v962, %v961
    %v1001 = vpack.c.bf16 %v964, %v963
    %v1002 = vpack.c.bf16 %v966, %v965
    %v1003 = vpack.c.bf16 %v968, %v967
    %v1004 = vpack.c.bf16 %v970, %v969
    %v1005 = vpack.c.bf16 %v972, %v971
    %v1006 = vpack.c.bf16 %v974, %v973
    %v1039 = vunpack.c.l.b16 %v975
    %v1040 = vunpack.c.h.b16 %v975
    %v1041 = vunpack.c.l.b16 %v976
    %v1042 = vunpack.c.h.b16 %v976
    %v1043 = vunpack.c.l.b16 %v977
    %v1044 = vunpack.c.h.b16 %v977
    %v1045 = vunpack.c.l.b16 %v978
    %v1046 = vunpack.c.h.b16 %v978
    %v1047 = vunpack.c.l.b16 %v979
    %v1048 = vunpack.c.h.b16 %v979
    %v1049 = vunpack.c.l.b16 %v980
    %v1050 = vunpack.c.h.b16 %v980
    %v1051 = vunpack.c.l.b16 %v981
    %v1052 = vunpack.c.h.b16 %v981
    %v1053 = vunpack.c.l.b16 %v982
    %v1054 = vunpack.c.h.b16 %v982
    %v1055 = vunpack.c.l.b16 %v983
    %v1056 = vunpack.c.h.b16 %v983
    %v1057 = vunpack.c.l.b16 %v984
    %v1058 = vunpack.c.h.b16 %v984
    %v1059 = vunpack.c.l.b16 %v985
    %v1060 = vunpack.c.h.b16 %v985
    %v1061 = vunpack.c.l.b16 %v986
    %v1062 = vunpack.c.h.b16 %v986
    %v1063 = vunpack.c.l.b16 %v987
    %v1064 = vunpack.c.h.b16 %v987
    %v1065 = vunpack.c.l.b16 %v988
    %v1066 = vunpack.c.h.b16 %v988
    %v1067 = vunpack.c.l.b16 %v989
    %v1068 = vunpack.c.h.b16 %v989
    %v1069 = vunpack.c.l.b16 %v990
    %v1070 = vunpack.c.h.b16 %v990
    %v1071 = vunpack.c.l.b16 %v991
    %v1072 = vunpack.c.h.b16 %v991
    %v1073 = vunpack.c.l.b16 %v992
    %v1074 = vunpack.c.h.b16 %v992
    %v1075 = vunpack.c.l.b16 %v993
    %v1076 = vunpack.c.h.b16 %v993
    %v1077 = vunpack.c.l.b16 %v994
    %v1078 = vunpack.c.h.b16 %v994
    %v1079 = vunpack.c.l.b16 %v995
    %v1080 = vunpack.c.h.b16 %v995
    %v1081 = vunpack.c.l.b16 %v996
    %v1082 = vunpack.c.h.b16 %v996
    %v1083 = vunpack.c.l.b16 %v997
    %v1084 = vunpack.c.h.b16 %v997
    %v1085 = vunpack.c.l.b16 %v998
    %v1086 = vunpack.c.h.b16 %v998
    %v1087 = vunpack.c.l.b16 %v999
    %v1088 = vunpack.c.h.b16 %v999
    %v1089 = vunpack.c.l.b16 %v1000
    %v1090 = vunpack.c.h.b16 %v1000
    %v1091 = vunpack.c.l.b16 %v1001
    %v1092 = vunpack.c.h.b16 %v1001
    %v1093 = vunpack.c.l.b16 %v1002
    %v1094 = vunpack.c.h.b16 %v1002
    %v1095 = vunpack.c.l.b16 %v1003
    %v1096 = vunpack.c.h.b16 %v1003
    %v1097 = vunpack.c.l.b16 %v1004
    %v1098 = vunpack.c.h.b16 %v1004
    %v1099 = vunpack.c.l.b16 %v1005
    %v1100 = vunpack.c.h.b16 %v1005
    %v1101 = vunpack.c.l.b16 %v1006
    %v1102 = vunpack.c.h.b16 %v1006
    %v1103 = vpack.c.b16 %v1039, %v1039
    %v1104 = vpack.c.b16 %v1040, %v1040
    %v1105 = vpack.c.b16 %v1041, %v1041
    %v1106 = vpack.c.b16 %v1042, %v1042
    %v1107 = vpack.c.b16 %v1043, %v1043
    %v1108 = vpack.c.b16 %v1044, %v1044
    %v1109 = vpack.c.b16 %v1045, %v1045
    %v1110 = vpack.c.b16 %v1046, %v1046
    %v1111 = vpack.c.b16 %v1047, %v1047
    %v1112 = vpack.c.b16 %v1048, %v1048
    %v1113 = vpack.c.b16 %v1049, %v1049
    %v1114 = vpack.c.b16 %v1050, %v1050
    %v1115 = vpack.c.b16 %v1051, %v1051
    %v1116 = vpack.c.b16 %v1052, %v1052
    %v1117 = vpack.c.b16 %v1053, %v1053
    %v1118 = vpack.c.b16 %v1054, %v1054
    %v1119 = vpack.c.b16 %v1055, %v1055
    %v1120 = vpack.c.b16 %v1056, %v1056
    %v1121 = vpack.c.b16 %v1057, %v1057
    %v1122 = vpack.c.b16 %v1058, %v1058
    %v1123 = vpack.c.b16 %v1059, %v1059
    %v1124 = vpack.c.b16 %v1060, %v1060
    %v1125 = vpack.c.b16 %v1061, %v1061
    %v1126 = vpack.c.b16 %v1062, %v1062
    %v1127 = vpack.c.b16 %v1063, %v1063
    %v1128 = vpack.c.b16 %v1064, %v1064
    %v1129 = vpack.c.b16 %v1065, %v1065
    %v1130 = vpack.c.b16 %v1066, %v1066
    %v1131 = vpack.c.b16 %v1067, %v1067
    %v1132 = vpack.c.b16 %v1068, %v1068
    %v1133 = vpack.c.b16 %v1069, %v1069
    %v1134 = vpack.c.b16 %v1070, %v1070
    %v1135 = vpack.c.b16 %v1071, %v1071
    %v1136 = vpack.c.b16 %v1072, %v1072
    %v1137 = vpack.c.b16 %v1073, %v1073
    %v1138 = vpack.c.b16 %v1074, %v1074
    %v1139 = vpack.c.b16 %v1075, %v1075
    %v1140 = vpack.c.b16 %v1076, %v1076
    %v1141 = vpack.c.b16 %v1077, %v1077
    %v1142 = vpack.c.b16 %v1078, %v1078
    %v1143 = vpack.c.b16 %v1079, %v1079
    %v1144 = vpack.c.b16 %v1080, %v1080
    %v1145 = vpack.c.b16 %v1081, %v1081
    %v1146 = vpack.c.b16 %v1082, %v1082
    %v1147 = vpack.c.b16 %v1083, %v1083
    %v1148 = vpack.c.b16 %v1084, %v1084
    %v1149 = vpack.c.b16 %v1085, %v1085
    %v1150 = vpack.c.b16 %v1086, %v1086
    %v1151 = vpack.c.b16 %v1087, %v1087
    %v1152 = vpack.c.b16 %v1088, %v1088
    %v1153 = vpack.c.b16 %v1089, %v1089
    %v1154 = vpack.c.b16 %v1090, %v1090
    %v1155 = vpack.c.b16 %v1091, %v1091
    %v1156 = vpack.c.b16 %v1092, %v1092
    %v1157 = vpack.c.b16 %v1093, %v1093
    %v1158 = vpack.c.b16 %v1094, %v1094
    %v1159 = vpack.c.b16 %v1095, %v1095
    %v1160 = vpack.c.b16 %v1096, %v1096
    %v1161 = vpack.c.b16 %v1097, %v1097
    %v1162 = vpack.c.b16 %v1098, %v1098
    %v1163 = vpack.c.b16 %v1099, %v1099
    %v1164 = vpack.c.b16 %v1100, %v1100
    %v1165 = vpack.c.b16 %v1101, %v1101
    %v1166 = vpack.c.b16 %v1102, %v1102
    %1231 = vst [vmem:[%s2] sm:$0xf] %v1103
    %1232 = vst [vmem:[%s2 + $0x4] sm:$0xf] %v1104
    %1233 = vst [vmem:[%s2 + $0x8] sm:$0xf] %v1105
    %1234 = vst [vmem:[%s2 + $0xc] sm:$0xf] %v1106
    %1235 = vst [vmem:[%s2 + $0x10] sm:$0xf] %v1107
    %1236 = vst [vmem:[%s2 + $0x14] sm:$0xf] %v1108
    %1237 = vst [vmem:[%s2 + $0x18] sm:$0xf] %v1109
    %1238 = vst [vmem:[%s2 + $0x1c] sm:$0xf] %v1110
    %1239 = vst [vmem:[%s2 + $0x20] sm:$0xf] %v1111
    %1240 = vst [vmem:[%s2 + $0x24] sm:$0xf] %v1112
    %1241 = vst [vmem:[%s2 + $0x28] sm:$0xf] %v1113
    %1242 = vst [vmem:[%s2 + $0x2c] sm:$0xf] %v1114
    %1243 = vst [vmem:[%s2 + $0x30] sm:$0xf] %v1115
    %1244 = vst [vmem:[%s2 + $0x34] sm:$0xf] %v1116
    %1245 = vst [vmem:[%s2 + $0x38] sm:$0xf] %v1117
    %1246 = vst [vmem:[%s2 + $0x3c] sm:$0xf] %v1118
    %1247 = vst [vmem:[%s2 + $0x40] sm:$0xf] %v1119
    %1248 = vst [vmem:[%s2 + $0x44] sm:$0xf] %v1120
    %1249 = vst [vmem:[%s2 + $0x48] sm:$0xf] %v1121
    %1250 = vst [vmem:[%s2 + $0x4c] sm:$0xf] %v1122
    %1251 = vst [vmem:[%s2 + $0x50] sm:$0xf] %v1123
    %1252 = vst [vmem:[%s2 + $0x54] sm:$0xf] %v1124
    %1253 = vst [vmem:[%s2 + $0x58] sm:$0xf] %v1125
    %1254 = vst [vmem:[%s2 + $0x5c] sm:$0xf] %v1126
    %1255 = vst [vmem:[%s2 + $0x60] sm:$0xf] %v1127
    %1256 = vst [vmem:[%s2 + $0x64] sm:$0xf] %v1128
    %1257 = vst [vmem:[%s2 + $0x68] sm:$0xf] %v1129
    %1258 = vst [vmem:[%s2 + $0x6c] sm:$0xf] %v1130
    %1259 = vst [vmem:[%s2 + $0x70] sm:$0xf] %v1131
    %1260 = vst [vmem:[%s2 + $0x74] sm:$0xf] %v1132
    %1261 = vst [vmem:[%s2 + $0x78] sm:$0xf] %v1133
    %1262 = vst [vmem:[%s2 + $0x7c] sm:$0xf] %v1134
    %1263 = vst [vmem:[%s2 + $0x80] sm:$0xf] %v1135
    %1264 = vst [vmem:[%s2 + $0x84] sm:$0xf] %v1136
    %1265 = vst [vmem:[%s2 + $0x88] sm:$0xf] %v1137
    %1266 = vst [vmem:[%s2 + $0x8c] sm:$0xf] %v1138
    %1267 = vst [vmem:[%s2 + $0x90] sm:$0xf] %v1139
    %1268 = vst [vmem:[%s2 + $0x94] sm:$0xf] %v1140
    %1269 = vst [vmem:[%s2 + $0x98] sm:$0xf] %v1141
    %1270 = vst [vmem:[%s2 + $0x9c] sm:$0xf] %v1142
    %1271 = vst [vmem:[%s2 + $0xa0] sm:$0xf] %v1143
    %1272 = vst [vmem:[%s2 + $0xa4] sm:$0xf] %v1144
    %1273 = vst [vmem:[%s2 + $0xa8] sm:$0xf] %v1145
    %1274 = vst [vmem:[%s2 + $0xac] sm:$0xf] %v1146
    %1275 = vst [vmem:[%s2 + $0xb0] sm:$0xf] %v1147
    %1276 = vst [vmem:[%s2 + $0xb4] sm:$0xf] %v1148
    %1277 = vst [vmem:[%s2 + $0xb8] sm:$0xf] %v1149
    %1278 = vst [vmem:[%s2 + $0xbc] sm:$0xf] %v1150
    %1279 = vst [vmem:[%s2 + $0xc0] sm:$0xf] %v1151
    %1280 = vst [vmem:[%s2 + $0xc4] sm:$0xf] %v1152
    %1281 = vst [vmem:[%s2 + $0xc8] sm:$0xf] %v1153
    %1282 = vst [vmem:[%s2 + $0xcc] sm:$0xf] %v1154
    %1283 = vst [vmem:[%s2 + $0xd0] sm:$0xf] %v1155
    %1284 = vst [vmem:[%s2 + $0xd4] sm:$0xf] %v1156
    %1285 = vst [vmem:[%s2 + $0xd8] sm:$0xf] %v1157
    %1286 = vst [vmem:[%s2 + $0xdc] sm:$0xf] %v1158
    %1287 = vst [vmem:[%s2 + $0xe0] sm:$0xf] %v1159
    %1288 = vst [vmem:[%s2 + $0xe4] sm:$0xf] %v1160
    %1289 = vst [vmem:[%s2 + $0xe8] sm:$0xf] %v1161
    %1290 = vst [vmem:[%s2 + $0xec] sm:$0xf] %v1162
    %1291 = vst [vmem:[%s2 + $0xf0] sm:$0xf] %v1163
    %1292 = vst [vmem:[%s2 + $0xf4] sm:$0xf] %v1164
    %1293 = vst [vmem:[%s2 + $0xf8] sm:$0xf] %v1165
    %1294 = vst [vmem:[%s2 + $0xfc] sm:$0xf] %v1166
    %v1295 = vunpack.c.l.bf16 %v975
    %v1296 = vunpack.c.h.bf16 %v975
    %v1297 = vunpack.c.l.bf16 %v976
    %v1298 = vunpack.c.h.bf16 %v976
    %v1299 = vunpack.c.l.bf16 %v977
    %v1300 = vunpack.c.h.bf16 %v977
    %v1301 = vunpack.c.l.bf16 %v978
    %v1302 = vunpack.c.h.bf16 %v978
    %v1303 = vunpack.c.l.bf16 %v979
    %v1304 = vunpack.c.h.bf16 %v979
    %v1305 = vunpack.c.l.bf16 %v980
    %v1306 = vunpack.c.h.bf16 %v980
    %v1307 = vunpack.c.l.bf16 %v981
    %v1308 = vunpack.c.h.bf16 %v981
    %v1309 = vunpack.c.l.bf16 %v982
    %v1310 = vunpack.c.h.bf16 %v982
    %v1311 = vunpack.c.l.bf16 %v983
    %v1312 = vunpack.c.h.bf16 %v983
    %v1313 = vunpack.c.l.bf16 %v984
    %v1314 = vunpack.c.h.bf16 %v984
    %v1315 = vunpack.c.l.bf16 %v985
    %v1316 = vunpack.c.h.bf16 %v985
    %v1317 = vunpack.c.l.bf16 %v986
    %v1318 = vunpack.c.h.bf16 %v986
    %v1319 = vunpack.c.l.bf16 %v987
    %v1320 = vunpack.c.h.bf16 %v987
    %v1321 = vunpack.c.l.bf16 %v988
    %v1322 = vunpack.c.h.bf16 %v988
    %v1323 = vunpack.c.l.bf16 %v989
    %v1324 = vunpack.c.h.bf16 %v989
    %v1325 = vunpack.c.l.bf16 %v990
    %v1326 = vunpack.c.h.bf16 %v990
    %v1327 = vunpack.c.l.bf16 %v991
    %v1328 = vunpack.c.h.bf16 %v991
    %v1329 = vunpack.c.l.bf16 %v992
    %v1330 = vunpack.c.h.bf16 %v992
    %v1331 = vunpack.c.l.bf16 %v993
    %v1332 = vunpack.c.h.bf16 %v993
    %v1333 = vunpack.c.l.bf16 %v994
    %v1334 = vunpack.c.h.bf16 %v994
    %v1335 = vunpack.c.l.bf16 %v995
    %v1336 = vunpack.c.h.bf16 %v995
    %v1337 = vunpack.c.l.bf16 %v996
    %v1338 = vunpack.c.h.bf16 %v996
    %v1339 = vunpack.c.l.bf16 %v997
    %v1340 = vunpack.c.h.bf16 %v997
    %v1341 = vunpack.c.l.bf16 %v998
    %v1342 = vunpack.c.h.bf16 %v998
    %v1343 = vunpack.c.l.bf16 %v999
    %v1344 = vunpack.c.h.bf16 %v999
    %v1345 = vunpack.c.l.bf16 %v1000
    %v1346 = vunpack.c.h.bf16 %v1000
    %v1347 = vunpack.c.l.bf16 %v1001
    %v1348 = vunpack.c.h.bf16 %v1001
    %v1349 = vunpack.c.l.bf16 %v1002
    %v1350 = vunpack.c.h.bf16 %v1002
    %v1351 = vunpack.c.l.bf16 %v1003
    %v1352 = vunpack.c.h.bf16 %v1003
    %v1353 = vunpack.c.l.bf16 %v1004
    %v1354 = vunpack.c.h.bf16 %v1004
    %v1355 = vunpack.c.l.bf16 %v1005
    %v1356 = vunpack.c.h.bf16 %v1005
    %v1357 = vunpack.c.l.bf16 %v1006
    %v1358 = vunpack.c.h.bf16 %v1006
    %v1359 = vadd.f32 %v1295, %v1296
    %v1360 = vadd.f32 %v1359, %v1297
    %v1361 = vadd.f32 %v1360, %v1298
    %v1362 = vadd.f32 %v1361, %v1299
    %v1363 = vadd.f32 %v1362, %v1300
    %v1364 = vadd.f32 %v1363, %v1301
    %v1365 = vadd.f32 %v1364, %v1302
    %v1366 = vadd.f32 %v1365, %v1303
    %v1367 = vadd.f32 %v1366, %v1304
    %v1368 = vadd.f32 %v1367, %v1305
    %v1369 = vadd.f32 %v1368, %v1306
    %v1370 = vadd.f32 %v1369, %v1307
    %v1371 = vadd.f32 %v1370, %v1308
    %v1372 = vadd.f32 %v1371, %v1309
    %v1373 = vadd.f32 %v1372, %v1310
    %v1374 = vadd.f32 %v1373, %v1311
    %v1375 = vadd.f32 %v1374, %v1312
    %v1376 = vadd.f32 %v1375, %v1313
    %v1377 = vadd.f32 %v1376, %v1314
    %v1378 = vadd.f32 %v1377, %v1315
    %v1379 = vadd.f32 %v1378, %v1316
    %v1380 = vadd.f32 %v1379, %v1317
    %v1381 = vadd.f32 %v1380, %v1318
    %v1382 = vadd.f32 %v1381, %v1319
    %v1383 = vadd.f32 %v1382, %v1320
    %v1384 = vadd.f32 %v1383, %v1321
    %v1385 = vadd.f32 %v1384, %v1322
    %v1386 = vadd.f32 %v1385, %v1323
    %v1387 = vadd.f32 %v1386, %v1324
    %v1388 = vadd.f32 %v1387, %v1325
    %v1389 = vadd.f32 %v1388, %v1326
    %v1390 = vadd.f32 %v1389, %v1327
    %v1391 = vadd.f32 %v1390, %v1328
    %v1392 = vadd.f32 %v1391, %v1329
    %v1393 = vadd.f32 %v1392, %v1330
    %v1394 = vadd.f32 %v1393, %v1331
    %v1395 = vadd.f32 %v1394, %v1332
    %v1396 = vadd.f32 %v1395, %v1333
    %v1397 = vadd.f32 %v1396, %v1334
    %v1398 = vadd.f32 %v1397, %v1335
    %v1399 = vadd.f32 %v1398, %v1336
    %v1400 = vadd.f32 %v1399, %v1337
    %v1401 = vadd.f32 %v1400, %v1338
    %v1402 = vadd.f32 %v1401, %v1339
    %v1403 = vadd.f32 %v1402, %v1340
    %v1404 = vadd.f32 %v1403, %v1341
    %v1405 = vadd.f32 %v1404, %v1342
    %v1406 = vadd.f32 %v1405, %v1343
    %v1407 = vadd.f32 %v1406, %v1344
    %v1408 = vadd.f32 %v1407, %v1345
    %v1409 = vadd.f32 %v1408, %v1346
    %v1410 = vadd.f32 %v1409, %v1347
    %v1411 = vadd.f32 %v1410, %v1348
    %v1412 = vadd.f32 %v1411, %v1349
    %v1413 = vadd.f32 %v1412, %v1350
    %v1414 = vadd.f32 %v1413, %v1351
    %v1415 = vadd.f32 %v1414, %v1352
    %v1416 = vadd.f32 %v1415, %v1353
    %v1417 = vadd.f32 %v1416, %v1354
    %v1418 = vadd.f32 %v1417, %v1355
    %v1419 = vadd.f32 %v1418, %v1356
    %v1420 = vadd.f32 %v1419, %v1357
    %v1421 = vadd.f32 %v1420, %v1358
    %v1422 = vrot.slane %v1421, 4
    %v1423 = vadd.f32 %v1421, %v1422
    %v1424 = vrot.slane %v1423, 2
    %v1425 = vadd.f32 %v1423, %v1424
    %v1426 = vrot.slane %v1425, 1
    %v1427 = vadd.f32 %v1425, %v1426
    %1428 = vst [vmem:[%s3] sm:$0x1] %v1427
    %v1429 = vmul.f32 %v1295, %v1295
    %v1430 = vmul.f32 %v1296, %v1296
    %v1431 = vmul.f32 %v1297, %v1297
    %v1432 = vmul.f32 %v1298, %v1298
    %v1433 = vmul.f32 %v1299, %v1299
    %v1434 = vmul.f32 %v1300, %v1300
    %v1435 = vmul.f32 %v1301, %v1301
    %v1436 = vmul.f32 %v1302, %v1302
    %v1437 = vmul.f32 %v1303, %v1303
    %v1438 = vmul.f32 %v1304, %v1304
    %v1439 = vmul.f32 %v1305, %v1305
    %v1440 = vmul.f32 %v1306, %v1306
    %v1441 = vmul.f32 %v1307, %v1307
    %v1442 = vmul.f32 %v1308, %v1308
    %v1443 = vmul.f32 %v1309, %v1309
    %v1444 = vmul.f32 %v1310, %v1310
    %v1445 = vmul.f32 %v1311, %v1311
    %v1446 = vmul.f32 %v1312, %v1312
    %v1447 = vmul.f32 %v1313, %v1313
    %v1448 = vmul.f32 %v1314, %v1314
    %v1449 = vmul.f32 %v1315, %v1315
    %v1450 = vmul.f32 %v1316, %v1316
    %v1451 = vmul.f32 %v1317, %v1317
    %v1452 = vmul.f32 %v1318, %v1318
    %v1453 = vmul.f32 %v1319, %v1319
    %v1454 = vmul.f32 %v1320, %v1320
    %v1455 = vmul.f32 %v1321, %v1321
    %v1456 = vmul.f32 %v1322, %v1322
    %v1457 = vmul.f32 %v1323, %v1323
    %v1458 = vmul.f32 %v1324, %v1324
    %v1459 = vmul.f32 %v1325, %v1325
    %v1460 = vmul.f32 %v1326, %v1326
    %v1461 = vmul.f32 %v1327, %v1327
    %v1462 = vmul.f32 %v1328, %v1328
    %v1463 = vmul.f32 %v1329, %v1329
    %v1464 = vmul.f32 %v1330, %v1330
    %v1465 = vmul.f32 %v1331, %v1331
    %v1466 = vmul.f32 %v1332, %v1332
    %v1467 = vmul.f32 %v1333, %v1333
    %v1468 = vmul.f32 %v1334, %v1334
    %v1469 = vmul.f32 %v1335, %v1335
    %v1470 = vmul.f32 %v1336, %v1336
    %v1471 = vmul.f32 %v1337, %v1337
    %v1472 = vmul.f32 %v1338, %v1338
    %v1473 = vmul.f32 %v1339, %v1339
    %v1474 = vmul.f32 %v1340, %v1340
    %v1475 = vmul.f32 %v1341, %v1341
    %v1476 = vmul.f32 %v1342, %v1342
    %v1477 = vmul.f32 %v1343, %v1343
    %v1478 = vmul.f32 %v1344, %v1344
    %v1479 = vmul.f32 %v1345, %v1345
    %v1480 = vmul.f32 %v1346, %v1346
    %v1481 = vmul.f32 %v1347, %v1347
    %v1482 = vmul.f32 %v1348, %v1348
    %v1483 = vmul.f32 %v1349, %v1349
    %v1484 = vmul.f32 %v1350, %v1350
    %v1485 = vmul.f32 %v1351, %v1351
    %v1486 = vmul.f32 %v1352, %v1352
    %v1487 = vmul.f32 %v1353, %v1353
    %v1488 = vmul.f32 %v1354, %v1354
    %v1489 = vmul.f32 %v1355, %v1355
    %v1490 = vmul.f32 %v1356, %v1356
    %v1491 = vmul.f32 %v1357, %v1357
    %v1492 = vmul.f32 %v1358, %v1358
    %v1493 = vadd.f32 %v1429, %v1430
    %v1494 = vadd.f32 %v1493, %v1431
    %v1495 = vadd.f32 %v1494, %v1432
    %v1496 = vadd.f32 %v1495, %v1433
    %v1497 = vadd.f32 %v1496, %v1434
    %v1498 = vadd.f32 %v1497, %v1435
    %v1499 = vadd.f32 %v1498, %v1436
    %v1500 = vadd.f32 %v1499, %v1437
    %v1501 = vadd.f32 %v1500, %v1438
    %v1502 = vadd.f32 %v1501, %v1439
    %v1503 = vadd.f32 %v1502, %v1440
    %v1504 = vadd.f32 %v1503, %v1441
    %v1505 = vadd.f32 %v1504, %v1442
    %v1506 = vadd.f32 %v1505, %v1443
    %v1507 = vadd.f32 %v1506, %v1444
    %v1508 = vadd.f32 %v1507, %v1445
    %v1509 = vadd.f32 %v1508, %v1446
    %v1510 = vadd.f32 %v1509, %v1447
    %v1511 = vadd.f32 %v1510, %v1448
    %v1512 = vadd.f32 %v1511, %v1449
    %v1513 = vadd.f32 %v1512, %v1450
    %v1514 = vadd.f32 %v1513, %v1451
    %v1515 = vadd.f32 %v1514, %v1452
    %v1516 = vadd.f32 %v1515, %v1453
    %v1517 = vadd.f32 %v1516, %v1454
    %v1518 = vadd.f32 %v1517, %v1455
    %v1519 = vadd.f32 %v1518, %v1456
    %v1520 = vadd.f32 %v1519, %v1457
    %v1521 = vadd.f32 %v1520, %v1458
    %v1522 = vadd.f32 %v1521, %v1459
    %v1523 = vadd.f32 %v1522, %v1460
    %v1524 = vadd.f32 %v1523, %v1461
    %v1525 = vadd.f32 %v1524, %v1462
    %v1526 = vadd.f32 %v1525, %v1463
    %v1527 = vadd.f32 %v1526, %v1464
    %v1528 = vadd.f32 %v1527, %v1465
    %v1529 = vadd.f32 %v1528, %v1466
    %v1530 = vadd.f32 %v1529, %v1467
    %v1531 = vadd.f32 %v1530, %v1468
    %v1532 = vadd.f32 %v1531, %v1469
    %v1533 = vadd.f32 %v1532, %v1470
    %v1534 = vadd.f32 %v1533, %v1471
    %v1535 = vadd.f32 %v1534, %v1472
    %v1536 = vadd.f32 %v1535, %v1473
    %v1537 = vadd.f32 %v1536, %v1474
    %v1538 = vadd.f32 %v1537, %v1475
    %v1539 = vadd.f32 %v1538, %v1476
    %v1540 = vadd.f32 %v1539, %v1477
    %v1541 = vadd.f32 %v1540, %v1478
    %v1542 = vadd.f32 %v1541, %v1479
    %v1543 = vadd.f32 %v1542, %v1480
    %v1544 = vadd.f32 %v1543, %v1481
    %v1545 = vadd.f32 %v1544, %v1482
    %v1546 = vadd.f32 %v1545, %v1483
    %v1547 = vadd.f32 %v1546, %v1484
    %v1548 = vadd.f32 %v1547, %v1485
    %v1549 = vadd.f32 %v1548, %v1486
    %v1550 = vadd.f32 %v1549, %v1487
    %v1551 = vadd.f32 %v1550, %v1488
    %v1552 = vadd.f32 %v1551, %v1489
    %v1553 = vadd.f32 %v1552, %v1490
    %v1554 = vadd.f32 %v1553, %v1491
    %v1555 = vadd.f32 %v1554, %v1492
    %v1556 = vrot.slane %v1555, 4
    %v1557 = vadd.f32 %v1555, %v1556
    %v1558 = vrot.slane %v1557, 2
    %v1559 = vadd.f32 %v1557, %v1558
    %v1560 = vrot.slane %v1559, 1
    %v1561 = vadd.f32 %v1559, %v1560
    %1562 = vst [vmem:[%s3 + $0x1] sm:$0x1] %v1561
  $region17: #{cnn_block_forward.2} parent=0 // pred_fallthru
    _
  // Predicated region
  $region18: #{cnn_block_forward.2} parent=0 // pred_check
    _
  $region19: #{cnn_block_forward.2} parent=0 // pred_check_branch
    %1564 = sbr.rel (0) target = $region21
  $region20: #{cnn_block_forward.2} parent=0 // pred_region
    _
  $region21: #{cnn_block_forward.2} parent=0 // pred_fallthru
    _
  // Predicated region
  $region22: #{cnn_block_forward.2} parent=0 // pred_check
    _
  $region23: #{cnn_block_forward.2} parent=0 // pred_check_branch
    %1566 = sbr.rel (0) target = $region25
  $region24: #{cnn_block_forward.2} parent=0 // pred_region
    _
  $region25: #{cnn_block_forward.2} parent=0 // pred_fallthru
    _
  // Predicated region
  $region26: #{cnn_block_forward.2} parent=0 // pred_check
    _
  $region27: #{cnn_block_forward.2} parent=0 // pred_check_branch
    %1568 = sbr.rel (0) target = $region29
  $region28: #{cnn_block_forward.2} parent=0 // pred_region
    _
  $region29: #{cnn_block_forward.2} parent=0 // pred_fallthru
    _
  // Predicated region
  $region30: #{cnn_block_forward.2} parent=0 // pred_check
    _
  $region31: #{cnn_block_forward.2} parent=0 // pred_check_branch
    %1570 = sbr.rel (0) target = $region33
  $region32: #{cnn_block_forward.2} parent=0 // pred_region
    _
  $region33: #{cnn_block_forward.2} parent=0 // pred_fallthru
    _

</llo_original>
